<compile_context>
chip_gen: v6e
topology: v6e:2x2x1
jax: 0.10.0
libtpu: 0.0.40
codegen_flags: <defaults>
</compile_context>

<pallas_src>
import jax
import jax.numpy as jnp
from jax.experimental import pallas as pl
from jax.experimental.pallas import tpu as pltpu

XYZ_L = 10
ANG_L = 4
XYZ_DIM = 3 + 2 * 3 * XYZ_L   # 63
ANG_DIM = 3 + 2 * 3 * ANG_L   # 27
IN_DIM = XYZ_DIM + ANG_DIM    # 90
OUT_DIM = 4                   # rgb(3) + density(1)

XYZ_PAD = 64                  # padded contraction dims (MXU/lane friendly)
ANG_PAD = 32


def _round_up(x, m):
    return ((x + m - 1) // m) * m


def _nerf_kernel(xyz_ref, ang_ref,
                 w1, b1, w2, b2, w3, b3, w4, b4, w5, b5,
                 w6x, w6h, b6, w7, b7, w8, b8,
                 wa, ba, w9, b9,
                 w10h, w10a, b10, w11t, b11,
                 out_ref):
    f32 = jnp.float32
    bf16 = jnp.bfloat16

    xyz = xyz_ref[...].astype(bf16)   # (tile, 64)
    ang = ang_ref[...].astype(bf16)   # (tile, 32)

    def dot(a, w_ref):
        # bf16 operands on the MXU, f32 accumulation.
        return jnp.dot(a, w_ref[...], preferred_element_type=f32)

    def layer(acc_f32, b_ref, act=True):
        # bias-add / ReLU in f32 (v5e VPU fast path), store as bf16.
        v = acc_f32 + b_ref[...]
        if act:
            v = jnp.maximum(v, 0.0)
        return v.astype(bf16)

    h = layer(dot(xyz, w1), b1)
    h = layer(dot(h, w2), b2)
    h = layer(dot(h, w3), b3)
    h = layer(dot(h, w4), b4)
    h = layer(dot(h, w5), b5)
    # skip connection: l6(cat(xyz, h)) == xyz @ W6[:64] + h @ W6[64:] + b6
    h = layer(dot(xyz, w6x) + dot(h, w6h), b6)
    h = layer(dot(h, w7), b7)
    h = layer(dot(h, w8), b8)

    # density head (256 -> 1) on VPU/XLU: elementwise mul + lane reduction in
    # f32 (avoids an N=1 full-width MXU pass).
    density = jnp.sum(h.astype(f32) * wa[...], axis=-1, keepdims=True) + ba[...]

    h = layer(dot(h, w9), b9, act=False)        # NOTE: no ReLU after l9
    # skip connection: l10(cat(h, ang)) == h @ W10[:256] + ang @ W10[256:] + b10
    h = layer(dot(h, w10h) + dot(ang, w10a), b10)     # (tile, 128) bf16

    # rgb head (128 -> 3) on VPU/XLU: three lane reductions; single fused store.
    hf = h.astype(f32)
    rgb = jnp.concatenate(
        [jnp.sum(hf * w11t[c:c + 1, :], axis=-1, keepdims=True)
         for c in range(3)], axis=-1) + b11[...]              # (tile, 3)
    out_ref[...] = jnp.concatenate([rgb, density], axis=-1).astype(out_ref.dtype)


def init_params(key):
    """Deterministic init mimicking nn.Linear: U(-1/sqrt(fan_in), 1/sqrt(fan_in)).
    Weights stored as (in, out) so forward computes x @ W + b (all f32)."""
    def linear(key, fan_in, fan_out):
        kw, kb = jax.random.split(key)
        bound = 1.0 / jnp.sqrt(fan_in)
        w = jax.random.uniform(kw, (fan_in, fan_out), jnp.float32, -bound, bound)
        b = jax.random.uniform(kb, (1, fan_out), jnp.float32, -bound, bound)
        return w, b

    keys = jax.random.split(key, 13)
    w1, b1 = linear(keys[0], XYZ_DIM, 256)
    w2, b2 = linear(keys[1], 256, 256)
    w3, b3 = linear(keys[2], 256, 256)
    w4, b4 = linear(keys[3], 256, 256)
    w5, b5 = linear(keys[4], 256, 256)
    w6, b6 = linear(keys[5], 256 + XYZ_DIM, 256)
    w6x, w6h = w6[:XYZ_DIM], w6[XYZ_DIM:]
    w7, b7 = linear(keys[6], 256, 256)
    w8, b8 = linear(keys[7], 256, 256)
    w9, b9 = linear(keys[8], 256, 256)
    wa, ba = linear(keys[9], 256, 1)
    w10, b10 = linear(keys[10], 256 + ANG_DIM, 128)
    w10h, w10a = w10[:256], w10[256:]           # explicit split (h rows, ang rows)
    w11, b11 = linear(keys[11], 128, 3)
    return (w1, b1, w2, b2, w3, b3, w4, b4, w5, b5,
            w6x, w6h, b6, w7, b7, w8, b8,
            wa, ba, w9, b9,
            w10h, w10a, b10, w11, b11)


def prepare_params(params):
    """Kernel-side param layout: bf16 weights (K padded to 64/32 where odd),
    f32 biases, f32 row-vector weights for the VPU density/rgb heads."""
    (w1, b1, w2, b2, w3, b3, w4, b4, w5, b5,
     w6x, w6h, b6, w7, b7, w8, b8,
     wa, ba, w9, b9,
     w10h, w10a, b10, w11, b11) = params
    bf16 = jnp.bfloat16

    def padk(w, k):   # zero-pad contraction (first) dim to k
        return jnp.pad(w, ((0, k - w.shape[0]), (0, 0)))

    return (
        padk(w1, XYZ_PAD).astype(bf16), b1,
        w2.astype(bf16), b2,
        w3.astype(bf16), b3,
        w4.astype(bf16), b4,
        w5.astype(bf16), b5,
        padk(w6x, XYZ_PAD).astype(bf16), w6h.astype(bf16), b6,
        w7.astype(bf16), b7,
        w8.astype(bf16), b8,
        wa.T,                      # (1, 256) f32 -> VPU density head
        ba.reshape(1, 1),          # (1, 1)   f32
        w9.astype(bf16), b9,
        w10h.astype(bf16), padk(w10a, ANG_PAD).astype(bf16), b10,
        w11.T,                     # (3, 128) f32 -> VPU rgb head
        b11,                       # (1, 3)   f32
    )


def nerf_forward_pallas(x, kparams, *, tile_n=2048):
    n = x.shape[0]
    tile = min(tile_n, _round_up(n, 8))
    n_pad = _round_up(n, tile)
    x_pad = jnp.pad(x, ((0, n_pad - n), (0, 0)))
    xyz = jnp.pad(x_pad[:, :XYZ_DIM], ((0, 0), (0, XYZ_PAD - XYZ_DIM)))
    ang = jnp.pad(x_pad[:, XYZ_DIM:IN_DIM], ((0, 0), (0, ANG_PAD - ANG_DIM)))

    full2d = lambda arr: pl.BlockSpec(arr.shape, lambda i: (0, 0))
    in_specs = [
        pl.BlockSpec((tile, XYZ_PAD), lambda i: (i, 0)),
        pl.BlockSpec((tile, ANG_PAD), lambda i: (i, 0)),
    ] + [full2d(p) for p in kparams]

    # Advisory cost estimate (lets XLA overlap the pad/split/slice with the kernel).
    flops_per_row = 2 * (XYZ_DIM * 256 + 4 * 256 * 256 + (256 + XYZ_DIM) * 256
                         + 3 * 256 * 256 + 256 * 1 + (256 + ANG_DIM) * 128
                         + 128 * 3)
    weight_bytes = sum(int(p.size) * p.dtype.itemsize for p in kparams)
    cost = pl.CostEstimate(
        flops=int(flops_per_row) * int(n_pad),
        transcendentals=0,
        bytes_accessed=int(n_pad) * (XYZ_PAD + ANG_PAD + OUT_DIM) * 4 + weight_bytes,
    )

    out = pl.pallas_call(
        _nerf_kernel,
        out_shape=jax.ShapeDtypeStruct((n_pad, OUT_DIM), jnp.float32),
        grid_spec=pltpu.PrefetchScalarGridSpec(
            num_scalar_prefetch=0,
            grid=(n_pad // tile,),
            in_specs=in_specs,
            out_specs=pl.BlockSpec((tile, OUT_DIM), lambda i: (i, 0)),
        ),
        compiler_params=pltpu.CompilerParams(
            dimension_semantics=("parallel",),
            vmem_limit_bytes=48 * 1024 * 1024),   # <= v7x's 64 MiB VMEM ceiling
        cost_estimate=cost,
    )(xyz, ang, *kparams)
    return out[:n]   # padded tail rows (bias-driven garbage) sliced off here


def nerf_forward_ref(x, params, matmul_dtype=jnp.bfloat16):
    """Pure-JAX reference mirroring the kernel's precision policy:
    matmul operands + stored activations in `matmul_dtype`, f32 accumulation,
    f32 bias/ReLU math, f32 density/rgb heads."""
    (w1, b1, w2, b2, w3, b3, w4, b4, w5, b5,
     w6x, w6h, b6, w7, b7, w8, b8,
     wa, ba, w9, b9,
     w10h, w10a, b10, w11, b11) = params
    f32 = jnp.float32

    def mm(a, w):
        return jnp.dot(a.astype(matmul_dtype), w.astype(matmul_dtype),
                       preferred_element_type=f32)

    def layer(acc, b, act=True):
        v = acc + b
        if act:
            v = jax.nn.relu(v)
        return v.astype(matmul_dtype)

    xyz = x[:, :XYZ_DIM]
    ang = x[:, XYZ_DIM:IN_DIM]
    h = layer(mm(xyz, w1), b1)
    h = layer(mm(h, w2), b2)
    h = layer(mm(h, w3), b3)
    h = layer(mm(h, w4), b4)
    h = layer(mm(h, w5), b5)
    h = layer(mm(xyz, w6x) + mm(h, w6h), b6)
    h = layer(mm(h, w7), b7)
    h = layer(mm(h, w8), b8)
    density = h.astype(f32) @ wa + ba                  # f32 head (matches kernel)
    h = layer(mm(h, w9), b9, act=False)
    h = layer(mm(h, w10h) + mm(ang, w10a), b10)
    rgb = h.astype(f32) @ w11 + b11                    # f32 head (matches kernel)
    return jnp.concatenate([rgb, density], axis=-1)


if __name__ == "__main__":
    key = jax.random.PRNGKey(0)
    kx, kp = jax.random.split(key)
    batch = 16
    x = jax.random.normal(kx, (batch, IN_DIM), jnp.float32)
    params = init_params(kp)
    kparams = prepare_params(params)

    out = jax.block_until_ready(nerf_forward_pallas(x, kparams))

    ref = nerf_forward_ref(x, params, matmul_dtype=jnp.bfloat16)
    assert out.shape == (batch, OUT_DIM), out.shape
    max_err = jnp.max(jnp.abs(out - ref))
    assert jnp.allclose(out, ref, rtol=2e-2, atol=2e-2), \
        f"max abs err = {max_err}"
    print("KERNEL_OK")
</pallas_src>

<mosaic_0001>
module attributes {stable_mosaic.version = 11 : i64} {
  func.func @_nerf_kernel(%arg0: i32, %arg1: memref<16x64xf32, #tpu.memory_space<vmem>>, %arg2: memref<16x32xf32, #tpu.memory_space<vmem>>, %arg3: memref<64x256xbf16, #tpu.memory_space<vmem>>, %arg4: memref<1x256xf32, #tpu.memory_space<vmem>>, %arg5: memref<256x256xbf16, #tpu.memory_space<vmem>>, %arg6: memref<1x256xf32, #tpu.memory_space<vmem>>, %arg7: memref<256x256xbf16, #tpu.memory_space<vmem>>, %arg8: memref<1x256xf32, #tpu.memory_space<vmem>>, %arg9: memref<256x256xbf16, #tpu.memory_space<vmem>>, %arg10: memref<1x256xf32, #tpu.memory_space<vmem>>, %arg11: memref<256x256xbf16, #tpu.memory_space<vmem>>, %arg12: memref<1x256xf32, #tpu.memory_space<vmem>>, %arg13: memref<64x256xbf16, #tpu.memory_space<vmem>>, %arg14: memref<256x256xbf16, #tpu.memory_space<vmem>>, %arg15: memref<1x256xf32, #tpu.memory_space<vmem>>, %arg16: memref<256x256xbf16, #tpu.memory_space<vmem>>, %arg17: memref<1x256xf32, #tpu.memory_space<vmem>>, %arg18: memref<256x256xbf16, #tpu.memory_space<vmem>>, %arg19: memref<1x256xf32, #tpu.memory_space<vmem>>, %arg20: memref<1x256xf32, #tpu.memory_space<vmem>>, %arg21: memref<1x1xf32, #tpu.memory_space<vmem>>, %arg22: memref<256x256xbf16, #tpu.memory_space<vmem>>, %arg23: memref<1x256xf32, #tpu.memory_space<vmem>>, %arg24: memref<256x128xbf16, #tpu.memory_space<vmem>>, %arg25: memref<32x128xbf16, #tpu.memory_space<vmem>>, %arg26: memref<1x128xf32, #tpu.memory_space<vmem>>, %arg27: memref<3x128xf32, #tpu.memory_space<vmem>>, %arg28: memref<1x3xf32, #tpu.memory_space<vmem>>, %arg29: memref<16x4xf32, #tpu.memory_space<vmem>>) attributes {dimension_semantics = [#tpu.dimension_semantics<parallel>], iteration_bounds = array<i64: 1>, scalar_prefetch = 0 : i64, scratch_operands = 0 : i64, tpu.core_type = #tpu.core_type<tc>, window_params = [{transform_indices = @transform_0, window_bounds = array<i64: 16, 64>}, {transform_indices = @transform_1, window_bounds = array<i64: 16, 32>}, {pipeline_mode = #tpu.pipeline_mode<synchronous>, transform_indices = @transform_2, window_bounds = array<i64: 64, 256>}, {pipeline_mode = #tpu.pipeline_mode<synchronous>, transform_indices = @transform_3, window_bounds = array<i64: 1, 256>}, {pipeline_mode = #tpu.pipeline_mode<synchronous>, transform_indices = @transform_4, window_bounds = array<i64: 256, 256>}, {pipeline_mode = #tpu.pipeline_mode<synchronous>, transform_indices = @transform_5, window_bounds = array<i64: 1, 256>}, {pipeline_mode = #tpu.pipeline_mode<synchronous>, transform_indices = @transform_6, window_bounds = array<i64: 256, 256>}, {pipeline_mode = #tpu.pipeline_mode<synchronous>, transform_indices = @transform_7, window_bounds = array<i64: 1, 256>}, {pipeline_mode = #tpu.pipeline_mode<synchronous>, transform_indices = @transform_8, window_bounds = array<i64: 256, 256>}, {pipeline_mode = #tpu.pipeline_mode<synchronous>, transform_indices = @transform_9, window_bounds = array<i64: 1, 256>}, {pipeline_mode = #tpu.pipeline_mode<synchronous>, transform_indices = @transform_10, window_bounds = array<i64: 256, 256>}, {pipeline_mode = #tpu.pipeline_mode<synchronous>, transform_indices = @transform_11, window_bounds = array<i64: 1, 256>}, {pipeline_mode = #tpu.pipeline_mode<synchronous>, transform_indices = @transform_12, window_bounds = array<i64: 64, 256>}, {pipeline_mode = #tpu.pipeline_mode<synchronous>, transform_indices = @transform_13, window_bounds = array<i64: 256, 256>}, {pipeline_mode = #tpu.pipeline_mode<synchronous>, transform_indices = @transform_14, window_bounds = array<i64: 1, 256>}, {pipeline_mode = #tpu.pipeline_mode<synchronous>, transform_indices = @transform_15, window_bounds = array<i64: 256, 256>}, {pipeline_mode = #tpu.pipeline_mode<synchronous>, transform_indices = @transform_16, window_bounds = array<i64: 1, 256>}, {pipeline_mode = #tpu.pipeline_mode<synchronous>, transform_indices = @transform_17, window_bounds = array<i64: 256, 256>}, {pipeline_mode = #tpu.pipeline_mode<synchronous>, transform_indices = @transform_18, window_bounds = array<i64: 1, 256>}, {pipeline_mode = #tpu.pipeline_mode<synchronous>, transform_indices = @transform_19, window_bounds = array<i64: 1, 256>}, {pipeline_mode = #tpu.pipeline_mode<synchronous>, transform_indices = @transform_20, window_bounds = array<i64: 1, 1>}, {pipeline_mode = #tpu.pipeline_mode<synchronous>, transform_indices = @transform_21, window_bounds = array<i64: 256, 256>}, {pipeline_mode = #tpu.pipeline_mode<synchronous>, transform_indices = @transform_22, window_bounds = array<i64: 1, 256>}, {pipeline_mode = #tpu.pipeline_mode<synchronous>, transform_indices = @transform_23, window_bounds = array<i64: 256, 128>}, {pipeline_mode = #tpu.pipeline_mode<synchronous>, transform_indices = @transform_24, window_bounds = array<i64: 32, 128>}, {pipeline_mode = #tpu.pipeline_mode<synchronous>, transform_indices = @transform_25, window_bounds = array<i64: 1, 128>}, {pipeline_mode = #tpu.pipeline_mode<synchronous>, transform_indices = @transform_26, window_bounds = array<i64: 3, 128>}, {pipeline_mode = #tpu.pipeline_mode<synchronous>, transform_indices = @transform_27, window_bounds = array<i64: 1, 3>}, {transform_indices = @transform_28, window_bounds = array<i64: 16, 4>}]} {
    %c0 = arith.constant 0 : index
    %c0_0 = arith.constant 0 : index
    %0 = vector.load %arg1[%c0, %c0_0] : memref<16x64xf32, #tpu.memory_space<vmem>>, vector<16x64xf32>
    %1 = arith.truncf %0 : vector<16x64xf32> to vector<16x64xbf16>
    %c0_1 = arith.constant 0 : index
    %c0_2 = arith.constant 0 : index
    %2 = vector.load %arg2[%c0_1, %c0_2] : memref<16x32xf32, #tpu.memory_space<vmem>>, vector<16x32xf32>
    %3 = arith.truncf %2 : vector<16x32xf32> to vector<16x32xbf16>
    %c0_3 = arith.constant 0 : index
    %c0_4 = arith.constant 0 : index
    %4 = vector.load %arg3[%c0_3, %c0_4] : memref<64x256xbf16, #tpu.memory_space<vmem>>, vector<64x256xbf16>
    %cst = arith.constant dense<0.000000e+00> : vector<16x256xf32>
    %5 = tpu.matmul %1, %4, %cst {dimension_numbers = #tpu.dot_dimension_numbers<[1], [0], [0], [1], [0, 0, 1, 1], [], []>} : vector<16x64xbf16>, vector<64x256xbf16>, vector<16x256xf32> -> vector<16x256xf32>
    %c0_5 = arith.constant 0 : index
    %c0_6 = arith.constant 0 : index
    %6 = vector.load %arg4[%c0_5, %c0_6] : memref<1x256xf32, #tpu.memory_space<vmem>>, vector<1x256xf32>
    %7 = vector.broadcast %6 : vector<1x256xf32> to vector<16x256xf32>
    %8 = arith.addf %5, %7 : vector<16x256xf32>
    %cst_7 = arith.constant 0.000000e+00 : f32
    %9 = vector.broadcast %cst_7 : f32 to vector<16x256xf32>
    %10 = arith.maximumf %8, %9 : vector<16x256xf32>
    %11 = arith.truncf %10 : vector<16x256xf32> to vector<16x256xbf16>
    %c0_8 = arith.constant 0 : index
    %c0_9 = arith.constant 0 : index
    %12 = vector.load %arg5[%c0_8, %c0_9] : memref<256x256xbf16, #tpu.memory_space<vmem>>, vector<256x256xbf16>
    %cst_10 = arith.constant dense<0.000000e+00> : vector<16x256xf32>
    %13 = tpu.matmul %11, %12, %cst_10 {dimension_numbers = #tpu.dot_dimension_numbers<[1], [0], [0], [1], [0, 0, 1, 1], [], []>} : vector<16x256xbf16>, vector<256x256xbf16>, vector<16x256xf32> -> vector<16x256xf32>
    %c0_11 = arith.constant 0 : index
    %c0_12 = arith.constant 0 : index
    %14 = vector.load %arg6[%c0_11, %c0_12] : memref<1x256xf32, #tpu.memory_space<vmem>>, vector<1x256xf32>
    %15 = vector.broadcast %14 : vector<1x256xf32> to vector<16x256xf32>
    %16 = arith.addf %13, %15 : vector<16x256xf32>
    %cst_13 = arith.constant 0.000000e+00 : f32
    %17 = vector.broadcast %cst_13 : f32 to vector<16x256xf32>
    %18 = arith.maximumf %16, %17 : vector<16x256xf32>
    %19 = arith.truncf %18 : vector<16x256xf32> to vector<16x256xbf16>
    %c0_14 = arith.constant 0 : index
    %c0_15 = arith.constant 0 : index
    %20 = vector.load %arg7[%c0_14, %c0_15] : memref<256x256xbf16, #tpu.memory_space<vmem>>, vector<256x256xbf16>
    %cst_16 = arith.constant dense<0.000000e+00> : vector<16x256xf32>
    %21 = tpu.matmul %19, %20, %cst_16 {dimension_numbers = #tpu.dot_dimension_numbers<[1], [0], [0], [1], [0, 0, 1, 1], [], []>} : vector<16x256xbf16>, vector<256x256xbf16>, vector<16x256xf32> -> vector<16x256xf32>
    %c0_17 = arith.constant 0 : index
    %c0_18 = arith.constant 0 : index
    %22 = vector.load %arg8[%c0_17, %c0_18] : memref<1x256xf32, #tpu.memory_space<vmem>>, vector<1x256xf32>
    %23 = vector.broadcast %22 : vector<1x256xf32> to vector<16x256xf32>
    %24 = arith.addf %21, %23 : vector<16x256xf32>
    %cst_19 = arith.constant 0.000000e+00 : f32
    %25 = vector.broadcast %cst_19 : f32 to vector<16x256xf32>
    %26 = arith.maximumf %24, %25 : vector<16x256xf32>
    %27 = arith.truncf %26 : vector<16x256xf32> to vector<16x256xbf16>
    %c0_20 = arith.constant 0 : index
    %c0_21 = arith.constant 0 : index
    %28 = vector.load %arg9[%c0_20, %c0_21] : memref<256x256xbf16, #tpu.memory_space<vmem>>, vector<256x256xbf16>
    %cst_22 = arith.constant dense<0.000000e+00> : vector<16x256xf32>
    %29 = tpu.matmul %27, %28, %cst_22 {dimension_numbers = #tpu.dot_dimension_numbers<[1], [0], [0], [1], [0, 0, 1, 1], [], []>} : vector<16x256xbf16>, vector<256x256xbf16>, vector<16x256xf32> -> vector<16x256xf32>
    %c0_23 = arith.constant 0 : index
    %c0_24 = arith.constant 0 : index
    %30 = vector.load %arg10[%c0_23, %c0_24] : memref<1x256xf32, #tpu.memory_space<vmem>>, vector<1x256xf32>
    %31 = vector.broadcast %30 : vector<1x256xf32> to vector<16x256xf32>
    %32 = arith.addf %29, %31 : vector<16x256xf32>
    %cst_25 = arith.constant 0.000000e+00 : f32
    %33 = vector.broadcast %cst_25 : f32 to vector<16x256xf32>
    %34 = arith.maximumf %32, %33 : vector<16x256xf32>
    %35 = arith.truncf %34 : vector<16x256xf32> to vector<16x256xbf16>
    %c0_26 = arith.constant 0 : index
    %c0_27 = arith.constant 0 : index
    %36 = vector.load %arg11[%c0_26, %c0_27] : memref<256x256xbf16, #tpu.memory_space<vmem>>, vector<256x256xbf16>
    %cst_28 = arith.constant dense<0.000000e+00> : vector<16x256xf32>
    %37 = tpu.matmul %35, %36, %cst_28 {dimension_numbers = #tpu.dot_dimension_numbers<[1], [0], [0], [1], [0, 0, 1, 1], [], []>} : vector<16x256xbf16>, vector<256x256xbf16>, vector<16x256xf32> -> vector<16x256xf32>
    %c0_29 = arith.constant 0 : index
    %c0_30 = arith.constant 0 : index
    %38 = vector.load %arg12[%c0_29, %c0_30] : memref<1x256xf32, #tpu.memory_space<vmem>>, vector<1x256xf32>
    %39 = vector.broadcast %38 : vector<1x256xf32> to vector<16x256xf32>
    %40 = arith.addf %37, %39 : vector<16x256xf32>
    %cst_31 = arith.constant 0.000000e+00 : f32
    %41 = vector.broadcast %cst_31 : f32 to vector<16x256xf32>
    %42 = arith.maximumf %40, %41 : vector<16x256xf32>
    %43 = arith.truncf %42 : vector<16x256xf32> to vector<16x256xbf16>
    %c0_32 = arith.constant 0 : index
    %c0_33 = arith.constant 0 : index
    %44 = vector.load %arg13[%c0_32, %c0_33] : memref<64x256xbf16, #tpu.memory_space<vmem>>, vector<64x256xbf16>
    %cst_34 = arith.constant dense<0.000000e+00> : vector<16x256xf32>
    %45 = tpu.matmul %1, %44, %cst_34 {dimension_numbers = #tpu.dot_dimension_numbers<[1], [0], [0], [1], [0, 0, 1, 1], [], []>} : vector<16x64xbf16>, vector<64x256xbf16>, vector<16x256xf32> -> vector<16x256xf32>
    %c0_35 = arith.constant 0 : index
    %c0_36 = arith.constant 0 : index
    %46 = vector.load %arg14[%c0_35, %c0_36] : memref<256x256xbf16, #tpu.memory_space<vmem>>, vector<256x256xbf16>
    %cst_37 = arith.constant dense<0.000000e+00> : vector<16x256xf32>
    %47 = tpu.matmul %43, %46, %cst_37 {dimension_numbers = #tpu.dot_dimension_numbers<[1], [0], [0], [1], [0, 0, 1, 1], [], []>} : vector<16x256xbf16>, vector<256x256xbf16>, vector<16x256xf32> -> vector<16x256xf32>
    %48 = arith.addf %45, %47 : vector<16x256xf32>
    %c0_38 = arith.constant 0 : index
    %c0_39 = arith.constant 0 : index
    %49 = vector.load %arg15[%c0_38, %c0_39] : memref<1x256xf32, #tpu.memory_space<vmem>>, vector<1x256xf32>
    %50 = vector.broadcast %49 : vector<1x256xf32> to vector<16x256xf32>
    %51 = arith.addf %48, %50 : vector<16x256xf32>
    %cst_40 = arith.constant 0.000000e+00 : f32
    %52 = vector.broadcast %cst_40 : f32 to vector<16x256xf32>
    %53 = arith.maximumf %51, %52 : vector<16x256xf32>
    %54 = arith.truncf %53 : vector<16x256xf32> to vector<16x256xbf16>
    %c0_41 = arith.constant 0 : index
    %c0_42 = arith.constant 0 : index
    %55 = vector.load %arg16[%c0_41, %c0_42] : memref<256x256xbf16, #tpu.memory_space<vmem>>, vector<256x256xbf16>
    %cst_43 = arith.constant dense<0.000000e+00> : vector<16x256xf32>
    %56 = tpu.matmul %54, %55, %cst_43 {dimension_numbers = #tpu.dot_dimension_numbers<[1], [0], [0], [1], [0, 0, 1, 1], [], []>} : vector<16x256xbf16>, vector<256x256xbf16>, vector<16x256xf32> -> vector<16x256xf32>
    %c0_44 = arith.constant 0 : index
    %c0_45 = arith.constant 0 : index
    %57 = vector.load %arg17[%c0_44, %c0_45] : memref<1x256xf32, #tpu.memory_space<vmem>>, vector<1x256xf32>
    %58 = vector.broadcast %57 : vector<1x256xf32> to vector<16x256xf32>
    %59 = arith.addf %56, %58 : vector<16x256xf32>
    %cst_46 = arith.constant 0.000000e+00 : f32
    %60 = vector.broadcast %cst_46 : f32 to vector<16x256xf32>
    %61 = arith.maximumf %59, %60 : vector<16x256xf32>
    %62 = arith.truncf %61 : vector<16x256xf32> to vector<16x256xbf16>
    %c0_47 = arith.constant 0 : index
    %c0_48 = arith.constant 0 : index
    %63 = vector.load %arg18[%c0_47, %c0_48] : memref<256x256xbf16, #tpu.memory_space<vmem>>, vector<256x256xbf16>
    %cst_49 = arith.constant dense<0.000000e+00> : vector<16x256xf32>
    %64 = tpu.matmul %62, %63, %cst_49 {dimension_numbers = #tpu.dot_dimension_numbers<[1], [0], [0], [1], [0, 0, 1, 1], [], []>} : vector<16x256xbf16>, vector<256x256xbf16>, vector<16x256xf32> -> vector<16x256xf32>
    %c0_50 = arith.constant 0 : index
    %c0_51 = arith.constant 0 : index
    %65 = vector.load %arg19[%c0_50, %c0_51] : memref<1x256xf32, #tpu.memory_space<vmem>>, vector<1x256xf32>
    %66 = vector.broadcast %65 : vector<1x256xf32> to vector<16x256xf32>
    %67 = arith.addf %64, %66 : vector<16x256xf32>
    %cst_52 = arith.constant 0.000000e+00 : f32
    %68 = vector.broadcast %cst_52 : f32 to vector<16x256xf32>
    %69 = arith.maximumf %67, %68 : vector<16x256xf32>
    %70 = arith.truncf %69 : vector<16x256xf32> to vector<16x256xbf16>
    %71 = arith.extf %70 : vector<16x256xbf16> to vector<16x256xf32>
    %c0_53 = arith.constant 0 : index
    %c0_54 = arith.constant 0 : index
    %72 = vector.load %arg20[%c0_53, %c0_54] : memref<1x256xf32, #tpu.memory_space<vmem>>, vector<1x256xf32>
    %73 = vector.broadcast %72 : vector<1x256xf32> to vector<16x256xf32>
    %74 = arith.mulf %71, %73 : vector<16x256xf32>
    %cst_55 = arith.constant dense<0.000000e+00> : vector<16xf32>
    %75 = vector.multi_reduction <add>, %74, %cst_55 [1] : vector<16x256xf32> to vector<16xf32>
    %76 = vector.shape_cast %75 : vector<16xf32> to vector<16x1xf32>
    %c0_56 = arith.constant 0 : index
    %c0_57 = arith.constant 0 : index
    %77 = vector.load %arg21[%c0_56, %c0_57] : memref<1x1xf32, #tpu.memory_space<vmem>>, vector<1x1xf32>
    %78 = vector.broadcast %77 : vector<1x1xf32> to vector<16x1xf32>
    %79 = arith.addf %76, %78 : vector<16x1xf32>
    %c0_58 = arith.constant 0 : index
    %c0_59 = arith.constant 0 : index
    %80 = vector.load %arg22[%c0_58, %c0_59] : memref<256x256xbf16, #tpu.memory_space<vmem>>, vector<256x256xbf16>
    %cst_60 = arith.constant dense<0.000000e+00> : vector<16x256xf32>
    %81 = tpu.matmul %70, %80, %cst_60 {dimension_numbers = #tpu.dot_dimension_numbers<[1], [0], [0], [1], [0, 0, 1, 1], [], []>} : vector<16x256xbf16>, vector<256x256xbf16>, vector<16x256xf32> -> vector<16x256xf32>
    %c0_61 = arith.constant 0 : index
    %c0_62 = arith.constant 0 : index
    %82 = vector.load %arg23[%c0_61, %c0_62] : memref<1x256xf32, #tpu.memory_space<vmem>>, vector<1x256xf32>
    %83 = vector.broadcast %82 : vector<1x256xf32> to vector<16x256xf32>
    %84 = arith.addf %81, %83 : vector<16x256xf32>
    %85 = arith.truncf %84 : vector<16x256xf32> to vector<16x256xbf16>
    %c0_63 = arith.constant 0 : index
    %c0_64 = arith.constant 0 : index
    %86 = vector.load %arg24[%c0_63, %c0_64] : memref<256x128xbf16, #tpu.memory_space<vmem>>, vector<256x128xbf16>
    %cst_65 = arith.constant dense<0.000000e+00> : vector<16x128xf32>
    %87 = tpu.matmul %85, %86, %cst_65 {dimension_numbers = #tpu.dot_dimension_numbers<[1], [0], [0], [1], [0, 0, 1, 1], [], []>} : vector<16x256xbf16>, vector<256x128xbf16>, vector<16x128xf32> -> vector<16x128xf32>
    %c0_66 = arith.constant 0 : index
    %c0_67 = arith.constant 0 : index
    %88 = vector.load %arg25[%c0_66, %c0_67] : memref<32x128xbf16, #tpu.memory_space<vmem>>, vector<32x128xbf16>
    %cst_68 = arith.constant dense<0.000000e+00> : vector<16x128xf32>
    %89 = tpu.matmul %3, %88, %cst_68 {dimension_numbers = #tpu.dot_dimension_numbers<[1], [0], [0], [1], [0, 0, 1, 1], [], []>} : vector<16x32xbf16>, vector<32x128xbf16>, vector<16x128xf32> -> vector<16x128xf32>
    %90 = arith.addf %87, %89 : vector<16x128xf32>
    %c0_69 = arith.constant 0 : index
    %c0_70 = arith.constant 0 : index
    %91 = vector.load %arg26[%c0_69, %c0_70] : memref<1x128xf32, #tpu.memory_space<vmem>>, vector<1x128xf32>
    %92 = vector.broadcast %91 : vector<1x128xf32> to vector<16x128xf32>
    %93 = arith.addf %90, %92 : vector<16x128xf32>
    %cst_71 = arith.constant 0.000000e+00 : f32
    %94 = vector.broadcast %cst_71 : f32 to vector<16x128xf32>
    %95 = arith.maximumf %93, %94 : vector<16x128xf32>
    %96 = arith.truncf %95 : vector<16x128xf32> to vector<16x128xbf16>
    %97 = arith.extf %96 : vector<16x128xbf16> to vector<16x128xf32>
    %c0_72 = arith.constant 0 : index
    %c0_73 = arith.constant 0 : index
    %98 = vector.load %arg27[%c0_72, %c0_73] : memref<3x128xf32, #tpu.memory_space<vmem>>, vector<1x128xf32>
    %99 = vector.broadcast %98 : vector<1x128xf32> to vector<16x128xf32>
    %100 = arith.mulf %97, %99 : vector<16x128xf32>
    %cst_74 = arith.constant dense<0.000000e+00> : vector<16xf32>
    %101 = vector.multi_reduction <add>, %100, %cst_74 [1] : vector<16x128xf32> to vector<16xf32>
    %102 = vector.shape_cast %101 : vector<16xf32> to vector<16x1xf32>
    %c1 = arith.constant 1 : index
    %c0_75 = arith.constant 0 : index
    %103 = vector.load %arg27[%c1, %c0_75] : memref<3x128xf32, #tpu.memory_space<vmem>>, vector<1x128xf32>
    %104 = vector.broadcast %103 : vector<1x128xf32> to vector<16x128xf32>
    %105 = arith.mulf %97, %104 : vector<16x128xf32>
    %cst_76 = arith.constant dense<0.000000e+00> : vector<16xf32>
    %106 = vector.multi_reduction <add>, %105, %cst_76 [1] : vector<16x128xf32> to vector<16xf32>
    %107 = vector.shape_cast %106 : vector<16xf32> to vector<16x1xf32>
    %c2 = arith.constant 2 : index
    %c0_77 = arith.constant 0 : index
    %108 = vector.load %arg27[%c2, %c0_77] : memref<3x128xf32, #tpu.memory_space<vmem>>, vector<1x128xf32>
    %109 = vector.broadcast %108 : vector<1x128xf32> to vector<16x128xf32>
    %110 = arith.mulf %97, %109 : vector<16x128xf32>
    %cst_78 = arith.constant dense<0.000000e+00> : vector<16xf32>
    %111 = vector.multi_reduction <add>, %110, %cst_78 [1] : vector<16x128xf32> to vector<16xf32>
    %112 = vector.shape_cast %111 : vector<16xf32> to vector<16x1xf32>
    %113 = tpu.concatenate %102, %107, %112 in 1 : vector<16x1xf32>, vector<16x1xf32>, vector<16x1xf32> -> vector<16x3xf32>
    %c0_79 = arith.constant 0 : index
    %c0_80 = arith.constant 0 : index
    %114 = vector.load %arg28[%c0_79, %c0_80] : memref<1x3xf32, #tpu.memory_space<vmem>>, vector<1x3xf32>
    %115 = vector.broadcast %114 : vector<1x3xf32> to vector<16x3xf32>
    %116 = arith.addf %113, %115 : vector<16x3xf32>
    %117 = tpu.concatenate %116, %79 in 1 : vector<16x3xf32>, vector<16x1xf32> -> vector<16x4xf32>
    %c0_81 = arith.constant 0 : index
    %c0_82 = arith.constant 0 : index
    %118 = vector.load %arg29[%c0_81, %c0_82] : memref<16x4xf32, #tpu.memory_space<vmem>>, vector<16x4xf32>
    tpu.vector_store %arg29[%c0_81, %c0_82], %117 {strides = array<i32>} : memref<16x4xf32, #tpu.memory_space<vmem>>, vector<16x4xf32>,
    return
  }
  func.func @transform_0(%arg0: i32) -> (i32, i32) {
    %c0_i32 = arith.constant 0 : i32
    %c0_i32_0 = arith.constant 0 : i32
    return %arg0, %c0_i32 : i32, i32
  }
  func.func @transform_1(%arg0: i32) -> (i32, i32) {
    %c0_i32 = arith.constant 0 : i32
    %c0_i32_0 = arith.constant 0 : i32
    return %arg0, %c0_i32 : i32, i32
  }
  func.func @transform_2(%arg0: i32) -> (i32, i32) {
    %c0_i32 = arith.constant 0 : i32
    %c0_i32_0 = arith.constant 0 : i32
    %c0_i32_1 = arith.constant 0 : i32
    return %c0_i32, %c0_i32_0 : i32, i32
  }
  func.func @transform_3(%arg0: i32) -> (i32, i32) {
    %c0_i32 = arith.constant 0 : i32
    %c0_i32_0 = arith.constant 0 : i32
    %c0_i32_1 = arith.constant 0 : i32
    return %c0_i32, %c0_i32_0 : i32, i32
  }
  func.func @transform_4(%arg0: i32) -> (i32, i32) {
    %c0_i32 = arith.constant 0 : i32
    %c0_i32_0 = arith.constant 0 : i32
    %c0_i32_1 = arith.constant 0 : i32
    return %c0_i32, %c0_i32_0 : i32, i32
  }
  func.func @transform_5(%arg0: i32) -> (i32, i32) {
    %c0_i32 = arith.constant 0 : i32
    %c0_i32_0 = arith.constant 0 : i32
    %c0_i32_1 = arith.constant 0 : i32
    return %c0_i32, %c0_i32_0 : i32, i32
  }
  func.func @transform_6(%arg0: i32) -> (i32, i32) {
    %c0_i32 = arith.constant 0 : i32
    %c0_i32_0 = arith.constant 0 : i32
    %c0_i32_1 = arith.constant 0 : i32
    return %c0_i32, %c0_i32_0 : i32, i32
  }
  func.func @transform_7(%arg0: i32) -> (i32, i32) {
    %c0_i32 = arith.constant 0 : i32
    %c0_i32_0 = arith.constant 0 : i32
    %c0_i32_1 = arith.constant 0 : i32
    return %c0_i32, %c0_i32_0 : i32, i32
  }
  func.func @transform_8(%arg0: i32) -> (i32, i32) {
    %c0_i32 = arith.constant 0 : i32
    %c0_i32_0 = arith.constant 0 : i32
    %c0_i32_1 = arith.constant 0 : i32
    return %c0_i32, %c0_i32_0 : i32, i32
  }
  func.func @transform_9(%arg0: i32) -> (i32, i32) {
    %c0_i32 = arith.constant 0 : i32
    %c0_i32_0 = arith.constant 0 : i32
    %c0_i32_1 = arith.constant 0 : i32
    return %c0_i32, %c0_i32_0 : i32, i32
  }
  func.func @transform_10(%arg0: i32) -> (i32, i32) {
    %c0_i32 = arith.constant 0 : i32
    %c0_i32_0 = arith.constant 0 : i32
    %c0_i32_1 = arith.constant 0 : i32
    return %c0_i32, %c0_i32_0 : i32, i32
  }
  func.func @transform_11(%arg0: i32) -> (i32, i32) {
    %c0_i32 = arith.constant 0 : i32
    %c0_i32_0 = arith.constant 0 : i32
    %c0_i32_1 = arith.constant 0 : i32
    return %c0_i32, %c0_i32_0 : i32, i32
  }
  func.func @transform_12(%arg0: i32) -> (i32, i32) {
    %c0_i32 = arith.constant 0 : i32
    %c0_i32_0 = arith.constant 0 : i32
    %c0_i32_1 = arith.constant 0 : i32
    return %c0_i32, %c0_i32_0 : i32, i32
  }
  func.func @transform_13(%arg0: i32) -> (i32, i32) {
    %c0_i32 = arith.constant 0 : i32
    %c0_i32_0 = arith.constant 0 : i32
    %c0_i32_1 = arith.constant 0 : i32
    return %c0_i32, %c0_i32_0 : i32, i32
  }
  func.func @transform_14(%arg0: i32) -> (i32, i32) {
    %c0_i32 = arith.constant 0 : i32
    %c0_i32_0 = arith.constant 0 : i32
    %c0_i32_1 = arith.constant 0 : i32
    return %c0_i32, %c0_i32_0 : i32, i32
  }
  func.func @transform_15(%arg0: i32) -> (i32, i32) {
    %c0_i32 = arith.constant 0 : i32
    %c0_i32_0 = arith.constant 0 : i32
    %c0_i32_1 = arith.constant 0 : i32
    return %c0_i32, %c0_i32_0 : i32, i32
  }
  func.func @transform_16(%arg0: i32) -> (i32, i32) {
    %c0_i32 = arith.constant 0 : i32
    %c0_i32_0 = arith.constant 0 : i32
    %c0_i32_1 = arith.constant 0 : i32
    return %c0_i32, %c0_i32_0 : i32, i32
  }
  func.func @transform_17(%arg0: i32) -> (i32, i32) {
    %c0_i32 = arith.constant 0 : i32
    %c0_i32_0 = arith.constant 0 : i32
    %c0_i32_1 = arith.constant 0 : i32
    return %c0_i32, %c0_i32_0 : i32, i32
  }
  func.func @transform_18(%arg0: i32) -> (i32, i32) {
    %c0_i32 = arith.constant 0 : i32
    %c0_i32_0 = arith.constant 0 : i32
    %c0_i32_1 = arith.constant 0 : i32
    return %c0_i32, %c0_i32_0 : i32, i32
  }
  func.func @transform_19(%arg0: i32) -> (i32, i32) {
    %c0_i32 = arith.constant 0 : i32
    %c0_i32_0 = arith.constant 0 : i32
    %c0_i32_1 = arith.constant 0 : i32
    return %c0_i32, %c0_i32_0 : i32, i32
  }
  func.func @transform_20(%arg0: i32) -> (i32, i32) {
    %c0_i32 = arith.constant 0 : i32
    %c0_i32_0 = arith.constant 0 : i32
    %c0_i32_1 = arith.constant 0 : i32
    return %c0_i32, %c0_i32_0 : i32, i32
  }
  func.func @transform_21(%arg0: i32) -> (i32, i32) {
    %c0_i32 = arith.constant 0 : i32
    %c0_i32_0 = arith.constant 0 : i32
    %c0_i32_1 = arith.constant 0 : i32
    return %c0_i32, %c0_i32_0 : i32, i32
  }
  func.func @transform_22(%arg0: i32) -> (i32, i32) {
    %c0_i32 = arith.constant 0 : i32
    %c0_i32_0 = arith.constant 0 : i32
    %c0_i32_1 = arith.constant 0 : i32
    return %c0_i32, %c0_i32_0 : i32, i32
  }
  func.func @transform_23(%arg0: i32) -> (i32, i32) {
    %c0_i32 = arith.constant 0 : i32
    %c0_i32_0 = arith.constant 0 : i32
    %c0_i32_1 = arith.constant 0 : i32
    return %c0_i32, %c0_i32_0 : i32, i32
  }
  func.func @transform_24(%arg0: i32) -> (i32, i32) {
    %c0_i32 = arith.constant 0 : i32
    %c0_i32_0 = arith.constant 0 : i32
    %c0_i32_1 = arith.constant 0 : i32
    return %c0_i32, %c0_i32_0 : i32, i32
  }
  func.func @transform_25(%arg0: i32) -> (i32, i32) {
    %c0_i32 = arith.constant 0 : i32
    %c0_i32_0 = arith.constant 0 : i32
    %c0_i32_1 = arith.constant 0 : i32
    return %c0_i32, %c0_i32_0 : i32, i32
  }
  func.func @transform_26(%arg0: i32) -> (i32, i32) {
    %c0_i32 = arith.constant 0 : i32
    %c0_i32_0 = arith.constant 0 : i32
    %c0_i32_1 = arith.constant 0 : i32
    return %c0_i32, %c0_i32_0 : i32, i32
  }
  func.func @transform_27(%arg0: i32) -> (i32, i32) {
    %c0_i32 = arith.constant 0 : i32
    %c0_i32_0 = arith.constant 0 : i32
    %c0_i32_1 = arith.constant 0 : i32
    return %c0_i32, %c0_i32_0 : i32, i32
  }
  func.func @transform_28(%arg0: i32) -> (i32, i32) {
    %c0_i32 = arith.constant 0 : i32
    %c0_i32_0 = arith.constant 0 : i32
    return %arg0, %c0_i32 : i32, i32
  }
}

</mosaic_0001>

<llo_original>
// kernel: tpu_custom_call.1
$region0: #{tpu_custom_call.1}
  #allocation0 [shape = 'u32[]', space=smem, size = 0x4, offset = 0x4, fixed_abs, tag = 'smem constant byte address 0x4 - core index']
  #allocation1 [shape = 'u32[144,128]{1,0:T(1,128)}', space=vmem, size = 0x12000, scoped, tag = 'internal scratch']
  #allocation2 [shape = 'f32[1,1]{1,0:T(1,128)S(1)}', space=vmem, size = 0x200, scoped, tag = 'scoped memory for tpu_custom_call.1']
  %s0 = inlined_call_operand.hbm [shape: f32[16,64], index: 0, kind: input, shape index: {}]
  %s1 = inlined_call_operand.hbm [shape: f32[16,32], index: 1, kind: input, shape index: {}]
  %s2 = inlined_call_operand.hbm [shape: bf16[64,256], index: 2, kind: input, shape index: {}]
  %s3 = inlined_call_operand.vmem [shape: f32[1,256], index: 3, kind: input, shape index: {}]
  %s4 = inlined_call_operand.hbm [shape: bf16[256,256], index: 4, kind: input, shape index: {}]
  %s5 = inlined_call_operand.vmem [shape: f32[1,256], index: 5, kind: input, shape index: {}]
  %s6 = inlined_call_operand.hbm [shape: bf16[256,256], index: 6, kind: input, shape index: {}]
  %s7 = inlined_call_operand.vmem [shape: f32[1,256], index: 7, kind: input, shape index: {}]
  %s8 = inlined_call_operand.hbm [shape: bf16[256,256], index: 8, kind: input, shape index: {}]
  %s9 = inlined_call_operand.vmem [shape: f32[1,256], index: 9, kind: input, shape index: {}]
  %s10 = inlined_call_operand.hbm [shape: bf16[256,256], index: 10, kind: input, shape index: {}]
  %s11 = inlined_call_operand.vmem [shape: f32[1,256], index: 11, kind: input, shape index: {}]
  %s12 = inlined_call_operand.hbm [shape: bf16[64,256], index: 12, kind: input, shape index: {}]
  %s13 = inlined_call_operand.hbm [shape: bf16[256,256], index: 13, kind: input, shape index: {}]
  %s14 = inlined_call_operand.hbm [shape: f32[1,256], index: 14, kind: input, shape index: {}]
  %s15 = inlined_call_operand.hbm [shape: bf16[256,256], index: 15, kind: input, shape index: {}]
  %s16 = inlined_call_operand.hbm [shape: f32[1,256], index: 16, kind: input, shape index: {}]
  %s17 = inlined_call_operand.hbm [shape: bf16[256,256], index: 17, kind: input, shape index: {}]
  %s18 = inlined_call_operand.vmem [shape: f32[1,256], index: 18, kind: input, shape index: {}]
  %s19 = inlined_call_operand.vmem [shape: f32[1,256], index: 19, kind: input, shape index: {}]
  %s20 = inlined_call_operand.<no memory space> [shape: f32[1,1], index: 20, kind: input, shape index: {}]
  %s21 = inlined_call_operand.hbm [shape: bf16[256,256], index: 21, kind: input, shape index: {}]
  %s22 = inlined_call_operand.vmem [shape: f32[1,256], index: 22, kind: input, shape index: {}]
  %s23 = inlined_call_operand.hbm [shape: bf16[256,128], index: 23, kind: input, shape index: {}]
  %s24 = inlined_call_operand.vmem [shape: bf16[32,128], index: 24, kind: input, shape index: {}]
  %s25 = inlined_call_operand.vmem [shape: f32[1,128], index: 25, kind: input, shape index: {}]
  %s26 = inlined_call_operand.vmem [shape: f32[3,128], index: 26, kind: input, shape index: {}]
  %s27 = inlined_call_operand.vmem [shape: f32[1,3], index: 27, kind: input, shape index: {}]
  %s28 = inlined_call_operand.vmem [shape: f32[16,4], index: 28, kind: output, shape index: {}]
  %s29 = sld [smem:[#allocation0]]
  $region182: #{tpu_custom_call.1} parent=0
    _
  %s31 = ssub.s32 1, %s29
  %s32 = scalar_select 0, %s31, %s29
  %v33 = vstv %s20
  %34 = vst [vmem:[#allocation2] sm:$0x1] %v33
  $region1: #{tpu_custom_call.1} parent=0
    #allocation3 [shape = 'u8[8192]{0}', space=vmem, size = 0x2000, scoped, tag = 'input window, operand 0, single buffered']
    #allocation4 [shape = 's32[1]{0}', space=sflag, size = 0x4, scoped, tag = 'scoped memory for tpu_custom_call.1']
    #allocation5 [shape = 'u8[8192]{0}', space=vmem, size = 0x2000, scoped, tag = 'input window, operand 1, single buffered']
    #allocation6 [shape = 's32[1]{0}', space=sflag, size = 0x4, scoped, tag = 'scoped memory for tpu_custom_call.1']
    #allocation7 [shape = 'u8[32768]{0}', space=vmem, size = 0x8000, scoped, tag = 'input window, operand 2, single buffered']
    #allocation8 [shape = 'u8[131072]{0}', space=vmem, size = 0x20000, scoped, tag = 'input window, operand 4, single buffered']
    #allocation9 [shape = 's32[1]{0}', space=sflag, size = 0x4, scoped, tag = 'scoped memory for tpu_custom_call.1']
    #allocation10 [shape = 'u8[131072]{0}', space=vmem, size = 0x20000, scoped, tag = 'input window, operand 6, single buffered']
    #allocation11 [shape = 'u8[131072]{0}', space=vmem, size = 0x20000, scoped, tag = 'input window, operand 8, single buffered']
    #allocation12 [shape = 's32[1]{0}', space=sflag, size = 0x4, scoped, tag = 'scoped memory for tpu_custom_call.1']
    #allocation13 [shape = 'u8[131072]{0}', space=vmem, size = 0x20000, scoped, tag = 'input window, operand 10, single buffered']
    #allocation14 [shape = 'u8[32768]{0}', space=vmem, size = 0x8000, scoped, tag = 'input window, operand 12, single buffered']
    #allocation15 [shape = 's32[1]{0}', space=sflag, size = 0x4, scoped, tag = 'scoped memory for tpu_custom_call.1']
    #allocation16 [shape = 'u8[131072]{0}', space=vmem, size = 0x20000, scoped, tag = 'input window, operand 13, single buffered']
    #allocation17 [shape = 'u8[1024]{0}', space=vmem, size = 0x400, scoped, tag = 'input window, operand 14, single buffered']
    #allocation18 [shape = 's32[1]{0}', space=sflag, size = 0x4, scoped, tag = 'scoped memory for tpu_custom_call.1']
    #allocation19 [shape = 'u8[131072]{0}', space=vmem, size = 0x20000, scoped, tag = 'input window, operand 15, single buffered']
    #allocation20 [shape = 'u8[1024]{0}', space=vmem, size = 0x400, scoped, tag = 'input window, operand 16, single buffered']
    #allocation21 [shape = 's32[1]{0}', space=sflag, size = 0x4, scoped, tag = 'scoped memory for tpu_custom_call.1']
    #allocation22 [shape = 'u8[131072]{0}', space=vmem, size = 0x20000, scoped, tag = 'input window, operand 17, single buffered']
    #allocation23 [shape = 'u8[131072]{0}', space=vmem, size = 0x20000, scoped, tag = 'input window, operand 21, single buffered']
    #allocation24 [shape = 's32[1]{0}', space=sflag, size = 0x4, scoped, tag = 'scoped memory for tpu_custom_call.1']
    #allocation25 [shape = 'u8[65536]{0}', space=vmem, size = 0x10000, scoped, tag = 'input window, operand 23, single buffered']
    %35 = vsyncpa [#allocation4], 0
    %36 = vsyncpa [#allocation6], 0
    %37 = vsyncpa [#allocation9], 0
    %38 = vsyncpa [#allocation12], 0
    %39 = vsyncpa [#allocation15], 0
    %40 = vsyncpa [#allocation18], 0
    %41 = vsyncpa [#allocation21], 0
    %42 = vsyncpa [#allocation24], 0
    // Predicated region
    $region2: #{tpu_custom_call.1} parent=1 // pred_check
      _
    $region3: #{tpu_custom_call.1} parent=1 // pred_check_branch
      %44 = sbr.rel (0) target = $region5
    $region4: #{tpu_custom_call.1} parent=1 // pred_region
      %s46 = ssub.s32 256, 256
      %47 = vsyncadd [#allocation4], %s46
      %s48 = sshll.u32 [#allocation3], 4
      %s49 = int_to_ptr.vmem [resolvable:$true] %s48
      %54 = dma.hbm_to_vmem [thread:$0]  %s0, 256, %s49, [#allocation4], 128, 128, 8
    $region5: #{tpu_custom_call.1} parent=1 // pred_fallthru
      _
    // Predicated region
    $region6: #{tpu_custom_call.1} parent=1 // pred_check
      _
    $region7: #{tpu_custom_call.1} parent=1 // pred_check_branch
      %56 = sbr.rel (0) target = $region9
    $region8: #{tpu_custom_call.1} parent=1 // pred_region
      %s58 = ssub.s32 256, 256
      %59 = vsyncadd [#allocation6], %s58
      %s60 = sshll.u32 [#allocation5], 4
      %s61 = int_to_ptr.vmem [resolvable:$true] %s60
      %66 = dma.hbm_to_vmem [thread:$0]  %s1, 256, %s61, [#allocation6], 128, 128, 8
    $region9: #{tpu_custom_call.1} parent=1 // pred_fallthru
      _
    // Predicated region
    $region10: #{tpu_custom_call.1} parent=1 // pred_check
      _
    $region11: #{tpu_custom_call.1} parent=1 // pred_check_branch
      %68 = sbr.rel (0) target = $region13
    $region12: #{tpu_custom_call.1} parent=1 // pred_region
      %s70 = ssub.s32 1024, 1024
      %71 = vsyncadd [#allocation6], %s70
      %s72 = sshll.u32 [#allocation7], 4
      %s73 = int_to_ptr.vmem [resolvable:$true] %s72
      %78 = dma.hbm_to_vmem [thread:$0]  %s2, 1024, %s73, [#allocation6], 128, 128, 8
    $region13: #{tpu_custom_call.1} parent=1 // pred_fallthru
      _
    // Predicated region
    $region14: #{tpu_custom_call.1} parent=1 // pred_check
      _
    $region15: #{tpu_custom_call.1} parent=1 // pred_check_branch
      %80 = sbr.rel (0) target = $region17
    $region16: #{tpu_custom_call.1} parent=1 // pred_region
      _
    $region17: #{tpu_custom_call.1} parent=1 // pred_fallthru
      _
    // Predicated region
    $region18: #{tpu_custom_call.1} parent=1 // pred_check
      _
    $region19: #{tpu_custom_call.1} parent=1 // pred_check_branch
      %82 = sbr.rel (0) target = $region21
    $region20: #{tpu_custom_call.1} parent=1 // pred_region
      %s84 = ssub.s32 4096, 4096
      %85 = vsyncadd [#allocation9], %s84
      %s86 = sshll.u32 [#allocation8], 4
      %s87 = int_to_ptr.vmem [resolvable:$true] %s86
      %92 = dma.hbm_to_vmem [thread:$0]  %s4, 4096, %s87, [#allocation9], 128, 128, 8
    $region21: #{tpu_custom_call.1} parent=1 // pred_fallthru
      _
    // Predicated region
    $region22: #{tpu_custom_call.1} parent=1 // pred_check
      _
    $region23: #{tpu_custom_call.1} parent=1 // pred_check_branch
      %94 = sbr.rel (0) target = $region25
    $region24: #{tpu_custom_call.1} parent=1 // pred_region
      _
    $region25: #{tpu_custom_call.1} parent=1 // pred_fallthru
      _
    // Predicated region
    $region26: #{tpu_custom_call.1} parent=1 // pred_check
      _
    $region27: #{tpu_custom_call.1} parent=1 // pred_check_branch
      %96 = sbr.rel (0) target = $region29
    $region28: #{tpu_custom_call.1} parent=1 // pred_region
      %s98 = ssub.s32 4096, 4096
      %99 = vsyncadd [#allocation9], %s98
      %s100 = sshll.u32 [#allocation10], 4
      %s101 = int_to_ptr.vmem [resolvable:$true] %s100
      %106 = dma.hbm_to_vmem [thread:$0]  %s6, 4096, %s101, [#allocation9], 128, 128, 8
    $region29: #{tpu_custom_call.1} parent=1 // pred_fallthru
      _
    // Predicated region
    $region30: #{tpu_custom_call.1} parent=1 // pred_check
      _
    $region31: #{tpu_custom_call.1} parent=1 // pred_check_branch
      %108 = sbr.rel (0) target = $region33
    $region32: #{tpu_custom_call.1} parent=1 // pred_region
      _
    $region33: #{tpu_custom_call.1} parent=1 // pred_fallthru
      _
    // Predicated region
    $region34: #{tpu_custom_call.1} parent=1 // pred_check
      _
    $region35: #{tpu_custom_call.1} parent=1 // pred_check_branch
      %110 = sbr.rel (0) target = $region37
    $region36: #{tpu_custom_call.1} parent=1 // pred_region
      %s112 = ssub.s32 4096, 4096
      %113 = vsyncadd [#allocation12], %s112
      %s114 = sshll.u32 [#allocation11], 4
      %s115 = int_to_ptr.vmem [resolvable:$true] %s114
      %120 = dma.hbm_to_vmem [thread:$0]  %s8, 4096, %s115, [#allocation12], 128, 128, 8
    $region37: #{tpu_custom_call.1} parent=1 // pred_fallthru
      _
    // Predicated region
    $region38: #{tpu_custom_call.1} parent=1 // pred_check
      _
    $region39: #{tpu_custom_call.1} parent=1 // pred_check_branch
      %122 = sbr.rel (0) target = $region41
    $region40: #{tpu_custom_call.1} parent=1 // pred_region
      _
    $region41: #{tpu_custom_call.1} parent=1 // pred_fallthru
      _
    // Predicated region
    $region42: #{tpu_custom_call.1} parent=1 // pred_check
      _
    $region43: #{tpu_custom_call.1} parent=1 // pred_check_branch
      %124 = sbr.rel (0) target = $region45
    $region44: #{tpu_custom_call.1} parent=1 // pred_region
      %s126 = ssub.s32 4096, 4096
      %127 = vsyncadd [#allocation12], %s126
      %s128 = sshll.u32 [#allocation13], 4
      %s129 = int_to_ptr.vmem [resolvable:$true] %s128
      %134 = dma.hbm_to_vmem [thread:$0]  %s10, 4096, %s129, [#allocation12], 128, 128, 8
    $region45: #{tpu_custom_call.1} parent=1 // pred_fallthru
      _
    // Predicated region
    $region46: #{tpu_custom_call.1} parent=1 // pred_check
      _
    $region47: #{tpu_custom_call.1} parent=1 // pred_check_branch
      %136 = sbr.rel (0) target = $region49
    $region48: #{tpu_custom_call.1} parent=1 // pred_region
      _
    $region49: #{tpu_custom_call.1} parent=1 // pred_fallthru
      _
    // Predicated region
    $region50: #{tpu_custom_call.1} parent=1 // pred_check
      _
    $region51: #{tpu_custom_call.1} parent=1 // pred_check_branch
      %138 = sbr.rel (0) target = $region53
    $region52: #{tpu_custom_call.1} parent=1 // pred_region
      %s140 = ssub.s32 1024, 1024
      %141 = vsyncadd [#allocation15], %s140
      %s142 = sshll.u32 [#allocation14], 4
      %s143 = int_to_ptr.vmem [resolvable:$true] %s142
      %148 = dma.hbm_to_vmem [thread:$0]  %s12, 1024, %s143, [#allocation15], 128, 128, 8
    $region53: #{tpu_custom_call.1} parent=1 // pred_fallthru
      _
    // Predicated region
    $region54: #{tpu_custom_call.1} parent=1 // pred_check
      _
    $region55: #{tpu_custom_call.1} parent=1 // pred_check_branch
      %150 = sbr.rel (0) target = $region57
    $region56: #{tpu_custom_call.1} parent=1 // pred_region
      %s152 = ssub.s32 4096, 4096
      %153 = vsyncadd [#allocation15], %s152
      %s154 = sshll.u32 [#allocation16], 4
      %s155 = int_to_ptr.vmem [resolvable:$true] %s154
      %160 = dma.hbm_to_vmem [thread:$0]  %s13, 4096, %s155, [#allocation15], 128, 128, 8
    $region57: #{tpu_custom_call.1} parent=1 // pred_fallthru
      _
    // Predicated region
    $region58: #{tpu_custom_call.1} parent=1 // pred_check
      _
    $region59: #{tpu_custom_call.1} parent=1 // pred_check_branch
      %162 = sbr.rel (0) target = $region61
    $region60: #{tpu_custom_call.1} parent=1 // pred_region
      %s164 = ssub.s32 32, 32
      %165 = vsyncadd [#allocation18], %s164
      %s167 = sshll.u32 [#allocation17], 4
      %s168 = int_to_ptr.vmem [resolvable:$true] %s167
      %170 = dma.hbm_to_vmem [thread:$0]  %s14, 32, %s168, [#allocation18]
    $region61: #{tpu_custom_call.1} parent=1 // pred_fallthru
      _
    // Predicated region
    $region62: #{tpu_custom_call.1} parent=1 // pred_check
      _
    $region63: #{tpu_custom_call.1} parent=1 // pred_check_branch
      %172 = sbr.rel (0) target = $region65
    $region64: #{tpu_custom_call.1} parent=1 // pred_region
      %s174 = ssub.s32 4096, 4096
      %175 = vsyncadd [#allocation18], %s174
      %s176 = sshll.u32 [#allocation19], 4
      %s177 = int_to_ptr.vmem [resolvable:$true] %s176
      %182 = dma.hbm_to_vmem [thread:$0]  %s15, 4096, %s177, [#allocation18], 128, 128, 8
    $region65: #{tpu_custom_call.1} parent=1 // pred_fallthru
      _
    // Predicated region
    $region66: #{tpu_custom_call.1} parent=1 // pred_check
      _
    $region67: #{tpu_custom_call.1} parent=1 // pred_check_branch
      %184 = sbr.rel (0) target = $region69
    $region68: #{tpu_custom_call.1} parent=1 // pred_region
      %s186 = ssub.s32 32, 32
      %187 = vsyncadd [#allocation21], %s186
      %s189 = sshll.u32 [#allocation20], 4
      %s190 = int_to_ptr.vmem [resolvable:$true] %s189
      %192 = dma.hbm_to_vmem [thread:$0]  %s16, 32, %s190, [#allocation21]
    $region69: #{tpu_custom_call.1} parent=1 // pred_fallthru
      _
    // Predicated region
    $region70: #{tpu_custom_call.1} parent=1 // pred_check
      _
    $region71: #{tpu_custom_call.1} parent=1 // pred_check_branch
      %194 = sbr.rel (0) target = $region73
    $region72: #{tpu_custom_call.1} parent=1 // pred_region
      %s196 = ssub.s32 4096, 4096
      %197 = vsyncadd [#allocation21], %s196
      %s198 = sshll.u32 [#allocation22], 4
      %s199 = int_to_ptr.vmem [resolvable:$true] %s198
      %204 = dma.hbm_to_vmem [thread:$0]  %s17, 4096, %s199, [#allocation21], 128, 128, 8
    $region73: #{tpu_custom_call.1} parent=1 // pred_fallthru
      _
    // Predicated region
    $region74: #{tpu_custom_call.1} parent=1 // pred_check
      _
    $region75: #{tpu_custom_call.1} parent=1 // pred_check_branch
      %206 = sbr.rel (0) target = $region77
    $region76: #{tpu_custom_call.1} parent=1 // pred_region
      _
    $region77: #{tpu_custom_call.1} parent=1 // pred_fallthru
      _
    // Predicated region
    $region78: #{tpu_custom_call.1} parent=1 // pred_check
      _
    $region79: #{tpu_custom_call.1} parent=1 // pred_check_branch
      %208 = sbr.rel (0) target = $region81
    $region80: #{tpu_custom_call.1} parent=1 // pred_region
      _
    $region81: #{tpu_custom_call.1} parent=1 // pred_fallthru
      _
    // Predicated region
    $region82: #{tpu_custom_call.1} parent=1 // pred_check
      _
    $region83: #{tpu_custom_call.1} parent=1 // pred_check_branch
      %210 = sbr.rel (0) target = $region85
    $region84: #{tpu_custom_call.1} parent=1 // pred_region
      _
    $region85: #{tpu_custom_call.1} parent=1 // pred_fallthru
      _
    // Predicated region
    $region86: #{tpu_custom_call.1} parent=1 // pred_check
      _
    $region87: #{tpu_custom_call.1} parent=1 // pred_check_branch
      %212 = sbr.rel (0) target = $region89
    $region88: #{tpu_custom_call.1} parent=1 // pred_region
      %s214 = ssub.s32 4096, 4096
      %215 = vsyncadd [#allocation24], %s214
      %s216 = sshll.u32 [#allocation23], 4
      %s217 = int_to_ptr.vmem [resolvable:$true] %s216
      %222 = dma.hbm_to_vmem [thread:$0]  %s21, 4096, %s217, [#allocation24], 128, 128, 8
    $region89: #{tpu_custom_call.1} parent=1 // pred_fallthru
      _
    // Predicated region
    $region90: #{tpu_custom_call.1} parent=1 // pred_check
      _
    $region91: #{tpu_custom_call.1} parent=1 // pred_check_branch
      %224 = sbr.rel (0) target = $region93
    $region92: #{tpu_custom_call.1} parent=1 // pred_region
      _
    $region93: #{tpu_custom_call.1} parent=1 // pred_fallthru
      _
    // Predicated region
    $region94: #{tpu_custom_call.1} parent=1 // pred_check
      _
    $region95: #{tpu_custom_call.1} parent=1 // pred_check_branch
      %226 = sbr.rel (0) target = $region97
    $region96: #{tpu_custom_call.1} parent=1 // pred_region
      %s228 = ssub.s32 2048, 2048
      %229 = vsyncadd [#allocation24], %s228
      %s230 = sshll.u32 [#allocation25], 4
      %s231 = int_to_ptr.vmem [resolvable:$true] %s230
      %236 = dma.hbm_to_vmem [thread:$0]  %s23, 2048, %s231, [#allocation24], 64, 64, 4
    $region97: #{tpu_custom_call.1} parent=1 // pred_fallthru
      _
    // Predicated region
    $region98: #{tpu_custom_call.1} parent=1 // pred_check
      _
    $region99: #{tpu_custom_call.1} parent=1 // pred_check_branch
      %238 = sbr.rel (0) target = $region101
    $region100: #{tpu_custom_call.1} parent=1 // pred_region
      _
    $region101: #{tpu_custom_call.1} parent=1 // pred_fallthru
      _
    // Predicated region
    $region102: #{tpu_custom_call.1} parent=1 // pred_check
      _
    $region103: #{tpu_custom_call.1} parent=1 // pred_check_branch
      %240 = sbr.rel (0) target = $region105
    $region104: #{tpu_custom_call.1} parent=1 // pred_region
      _
    $region105: #{tpu_custom_call.1} parent=1 // pred_fallthru
      _
    // Predicated region
    $region106: #{tpu_custom_call.1} parent=1 // pred_check
      _
    $region107: #{tpu_custom_call.1} parent=1 // pred_check_branch
      %242 = sbr.rel (0) target = $region109
    $region108: #{tpu_custom_call.1} parent=1 // pred_region
      _
    $region109: #{tpu_custom_call.1} parent=1 // pred_fallthru
      _
    // Predicated region
    $region110: #{tpu_custom_call.1} parent=1 // pred_check
      _
    $region111: #{tpu_custom_call.1} parent=1 // pred_check_branch
      %244 = sbr.rel (0) target = $region113
    $region112: #{tpu_custom_call.1} parent=1 // pred_region
      _
    $region113: #{tpu_custom_call.1} parent=1 // pred_fallthru
      _
    // Predicated region
    $region114: #{tpu_custom_call.1} parent=1 // pred_check
      _
    $region115: #{tpu_custom_call.1} parent=1 // pred_check_branch
      %246 = sbr.rel (0) target = $region117
    $region116: #{tpu_custom_call.1} parent=1 // pred_region
      %247 = dma.done [#allocation4], 256
    $region117: #{tpu_custom_call.1} parent=1 // pred_fallthru
      _
    // Predicated region
    $region118: #{tpu_custom_call.1} parent=1 // pred_check
      _
    $region119: #{tpu_custom_call.1} parent=1 // pred_check_branch
      %249 = sbr.rel (0) target = $region121
    $region120: #{tpu_custom_call.1} parent=1 // pred_region
      %250 = dma.done [#allocation6], 256
    $region121: #{tpu_custom_call.1} parent=1 // pred_fallthru
      _
    // Predicated region
    $region122: #{tpu_custom_call.1} parent=1 // pred_check
      _
    $region123: #{tpu_custom_call.1} parent=1 // pred_check_branch
      %252 = sbr.rel (0) target = $region125
    $region124: #{tpu_custom_call.1} parent=1 // pred_region
      %253 = dma.done [#allocation6], 1024
    $region125: #{tpu_custom_call.1} parent=1 // pred_fallthru
      _
    // Predicated region
    $region126: #{tpu_custom_call.1} parent=1 // pred_check
      _
    $region127: #{tpu_custom_call.1} parent=1 // pred_check_branch
      %255 = sbr.rel (0) target = $region129
    $region128: #{tpu_custom_call.1} parent=1 // pred_region
      %256 = dma.done [#allocation9], 4096
    $region129: #{tpu_custom_call.1} parent=1 // pred_fallthru
      _
    // Predicated region
    $region130: #{tpu_custom_call.1} parent=1 // pred_check
      _
    $region131: #{tpu_custom_call.1} parent=1 // pred_check_branch
      %258 = sbr.rel (0) target = $region133
    $region132: #{tpu_custom_call.1} parent=1 // pred_region
      %259 = dma.done [#allocation9], 4096
    $region133: #{tpu_custom_call.1} parent=1 // pred_fallthru
      _
    // Predicated region
    $region134: #{tpu_custom_call.1} parent=1 // pred_check
      _
    $region135: #{tpu_custom_call.1} parent=1 // pred_check_branch
      %261 = sbr.rel (0) target = $region137
    $region136: #{tpu_custom_call.1} parent=1 // pred_region
      %262 = dma.done [#allocation12], 4096
    $region137: #{tpu_custom_call.1} parent=1 // pred_fallthru
      _
    // Predicated region
    $region138: #{tpu_custom_call.1} parent=1 // pred_check
      _
    $region139: #{tpu_custom_call.1} parent=1 // pred_check_branch
      %264 = sbr.rel (0) target = $region141
    $region140: #{tpu_custom_call.1} parent=1 // pred_region
      %265 = dma.done [#allocation12], 4096
    $region141: #{tpu_custom_call.1} parent=1 // pred_fallthru
      _
    // Predicated region
    $region142: #{tpu_custom_call.1} parent=1 // pred_check
      _
    $region143: #{tpu_custom_call.1} parent=1 // pred_check_branch
      %267 = sbr.rel (0) target = $region145
    $region144: #{tpu_custom_call.1} parent=1 // pred_region
      %268 = dma.done [#allocation15], 1024
    $region145: #{tpu_custom_call.1} parent=1 // pred_fallthru
      _
    // Predicated region
    $region146: #{tpu_custom_call.1} parent=1 // pred_check
      _
    $region147: #{tpu_custom_call.1} parent=1 // pred_check_branch
      %270 = sbr.rel (0) target = $region149
    $region148: #{tpu_custom_call.1} parent=1 // pred_region
      %271 = dma.done [#allocation15], 4096
    $region149: #{tpu_custom_call.1} parent=1 // pred_fallthru
      _
    // Predicated region
    $region150: #{tpu_custom_call.1} parent=1 // pred_check
      _
    $region151: #{tpu_custom_call.1} parent=1 // pred_check_branch
      %273 = sbr.rel (0) target = $region153
    $region152: #{tpu_custom_call.1} parent=1 // pred_region
      %274 = dma.done [#allocation18], 32
    $region153: #{tpu_custom_call.1} parent=1 // pred_fallthru
      _
    // Predicated region
    $region154: #{tpu_custom_call.1} parent=1 // pred_check
      _
    $region155: #{tpu_custom_call.1} parent=1 // pred_check_branch
      %276 = sbr.rel (0) target = $region157
    $region156: #{tpu_custom_call.1} parent=1 // pred_region
      %277 = dma.done [#allocation18], 4096
    $region157: #{tpu_custom_call.1} parent=1 // pred_fallthru
      _
    // Predicated region
    $region158: #{tpu_custom_call.1} parent=1 // pred_check
      _
    $region159: #{tpu_custom_call.1} parent=1 // pred_check_branch
      %279 = sbr.rel (0) target = $region161
    $region160: #{tpu_custom_call.1} parent=1 // pred_region
      %280 = dma.done [#allocation21], 32
    $region161: #{tpu_custom_call.1} parent=1 // pred_fallthru
      _
    // Predicated region
    $region162: #{tpu_custom_call.1} parent=1 // pred_check
      _
    $region163: #{tpu_custom_call.1} parent=1 // pred_check_branch
      %282 = sbr.rel (0) target = $region165
    $region164: #{tpu_custom_call.1} parent=1 // pred_region
      %283 = dma.done [#allocation21], 4096
    $region165: #{tpu_custom_call.1} parent=1 // pred_fallthru
      _
    // Predicated region
    $region166: #{tpu_custom_call.1} parent=1 // pred_check
      _
    $region167: #{tpu_custom_call.1} parent=1 // pred_check_branch
      %285 = sbr.rel (0) target = $region169
    $region168: #{tpu_custom_call.1} parent=1 // pred_region
      %286 = dma.done [#allocation24], 4096
    $region169: #{tpu_custom_call.1} parent=1 // pred_fallthru
      _
    // Predicated region
    $region170: #{tpu_custom_call.1} parent=1 // pred_check
      _
    $region171: #{tpu_custom_call.1} parent=1 // pred_check_branch
      %288 = sbr.rel (0) target = $region173
    $region172: #{tpu_custom_call.1} parent=1 // pred_region
      %289 = dma.done [#allocation24], 2048
    $region173: #{tpu_custom_call.1} parent=1 // pred_fallthru
      _
    %v291 = vld [vmem:[#allocation3] sm:$0xff]
    %v292 = vld [vmem:[#allocation3 + $0x8] sm:$0xff]
    %v293 = vpack.c.bf16 %v292, %v291
    %v294 = vld [vmem:[#allocation5] sm:$0xff]
    %v295 = vld [vmem:[#allocation5 + $0x8] sm:$0xff]
    %v296 = vpack.c.bf16 %v295, %v294
    %v297 = vld [vmem:[#allocation7] sm:$0xff]
    %v298 = vld [vmem:[#allocation7 + $0x8] sm:$0xff]
    %v299 = vld [vmem:[#allocation7 + $0x10] sm:$0xff]
    %v300 = vld [vmem:[#allocation7 + $0x18] sm:$0xff]
    %v301 = vld [vmem:[#allocation7 + $0x20] sm:$0xff]
    %v302 = vld [vmem:[#allocation7 + $0x28] sm:$0xff]
    %v303 = vld [vmem:[#allocation7 + $0x30] sm:$0xff]
    %v304 = vld [vmem:[#allocation7 + $0x38] sm:$0xff]
    %v305 = vld [vmem:[%s3] sm:$0x3]
    %v307 = vlaneseq
    %v308 = vshrl.u32 %v307, 7
    %v309 = vsub.s32 0, %v308
    %v310 = vrot.slane %v305, %v309
    %v311 = vlaneseq
    %v312 = vshrl.u32 %v311, 7
    %v313 = vsub.s32 1, %v312
    %v314 = vrot.slane %v305, %v313
    %v325 = vunpack.c.l.b16 %v297
    %v326 = vunpack.c.h.b16 %v297
    %v327 = vunpack.c.l.b16 %v298
    %v328 = vunpack.c.h.b16 %v298
    %v329 = vunpack.c.l.b16 %v299
    %v330 = vunpack.c.h.b16 %v299
    %v331 = vunpack.c.l.b16 %v300
    %v332 = vunpack.c.h.b16 %v300
    %v333 = vunpack.c.l.b16 %v301
    %v334 = vunpack.c.h.b16 %v301
    %v335 = vunpack.c.l.b16 %v302
    %v336 = vunpack.c.h.b16 %v302
    %v337 = vunpack.c.l.b16 %v303
    %v338 = vunpack.c.h.b16 %v303
    %v339 = vunpack.c.l.b16 %v304
    %v340 = vunpack.c.h.b16 %v304
    %v341 = vpack.c.b16 %v327, %v325
    %v342 = vpack.c.b16 %v328, %v326
    %v343 = vpack.c.b16 %v331, %v329
    %v344 = vpack.c.b16 %v332, %v330
    %v345 = vpack.c.b16 %v335, %v333
    %v346 = vpack.c.b16 %v336, %v334
    %v347 = vpack.c.b16 %v339, %v337
    %v348 = vpack.c.b16 %v340, %v338
    %vm357 = vcmask 523264
    %v359 = vsel %vm357, %v293, 0
    %361 = vmatprep.subr.bf16.mxu0 0
    %362 = vmatpush1.bf16.msra.mxu0 0
    %363 = vmatprep.subr.bf16.mxu0 0
    %364 = vmatpush1.bf16.msra.mxu0 0
    %365 = vmatprep.subr.bf16.mxu0 0
    %366 = vmatpush1.bf16.msra.mxu0 0
    %367 = vmatprep.subr.bf16.mxu0 0
    %368 = vmatpush1.bf16.msra.mxu0 0
    %369 = vmatprep.subr.bf16.mxu0 %v348
    %370 = vmatpush1.bf16.msra.mxu0 %v347
    %371 = vmatprep.subr.bf16.mxu0 %v346
    %372 = vmatpush1.bf16.msra.mxu0 %v345
    %373 = vmatprep.subr.bf16.mxu0 %v344
    %374 = vmatpush1.bf16.msra.mxu0 %v343
    %375 = vmatprep.subr.bf16.mxu0 %v342
    %376 = vmatpush1.bf16.msra.mxu0 %v341
    %377 = vmatprep.subr.bf16.mxu0 0
    %378 = vmatpush2.bf16.msra.mxu0 0
    %379 = vmatprep.subr.bf16.mxu0 0
    %380 = vmatpush2.bf16.msra.mxu0 0
    %381 = vmatprep.subr.bf16.mxu0 0
    %382 = vmatpush2.bf16.msra.mxu0 0
    %383 = vmatprep.subr.bf16.mxu0 0
    %384 = vmatpush2.bf16.msra.mxu0 0
    %385 = vmatprep.subr.bf16.mxu0 0
    %386 = vmatpush2.bf16.msra.mxu0 0
    %387 = vmatprep.subr.bf16.mxu0 0
    %388 = vmatpush2.bf16.msra.mxu0 0
    %389 = vmatprep.subr.bf16.mxu0 0
    %390 = vmatpush2.bf16.msra.mxu0 0
    %391 = vmatprep.subr.bf16.mxu0 0
    %392 = vmatpush2.bf16.msra.mxu0 0
    %393 = vmatprep.mubr.bf16.mxu0 0
    %394 = vmatmul.mubr.bf16.gmra.mxu0 %v359
    %v395 = vpop.f32.mrf.mxu0
    %v396 = vadd.f32 %v310, %v395
    %v397 = vpop.f32.mrf.mxu0
    %v398 = vadd.f32 %v314, %v397
    %v399 = vpop.f32.mrf.mxu0
    %v400 = vadd.f32 %v310, %v399
    %v401 = vpop.f32.mrf.mxu0
    %v402 = vadd.f32 %v314, %v401
    %403 = vdwg.mxu0
    %v404 = vmax.f32 %v396, 0.0
    %v405 = vmax.f32 %v398, 0.0
    %v406 = vmax.f32 %v400, 0.0
    %v407 = vmax.f32 %v402, 0.0
    %v408 = vpack.c.bf16 %v406, %v404
    %v409 = vpack.c.bf16 %v407, %v405
    %v410 = vld [vmem:[#allocation8] sm:$0xff]
    %v411 = vld [vmem:[#allocation8 + $0x8] sm:$0xff]
    %v412 = vld [vmem:[#allocation8 + $0x10] sm:$0xff]
    %v413 = vld [vmem:[#allocation8 + $0x18] sm:$0xff]
    %v414 = vld [vmem:[#allocation8 + $0x20] sm:$0xff]
    %v415 = vld [vmem:[#allocation8 + $0x28] sm:$0xff]
    %v416 = vld [vmem:[#allocation8 + $0x30] sm:$0xff]
    %v417 = vld [vmem:[#allocation8 + $0x38] sm:$0xff]
    %v418 = vld [vmem:[#allocation8 + $0x40] sm:$0xff]
    %v419 = vld [vmem:[#allocation8 + $0x48] sm:$0xff]
    %v420 = vld [vmem:[#allocation8 + $0x50] sm:$0xff]
    %v421 = vld [vmem:[#allocation8 + $0x58] sm:$0xff]
    %v422 = vld [vmem:[#allocation8 + $0x60] sm:$0xff]
    %v423 = vld [vmem:[#allocation8 + $0x68] sm:$0xff]
    %v424 = vld [vmem:[#allocation8 + $0x70] sm:$0xff]
    %v425 = vld [vmem:[#allocation8 + $0x78] sm:$0xff]
    %v426 = vld [vmem:[#allocation8 + $0x80] sm:$0xff]
    %v427 = vld [vmem:[#allocation8 + $0x88] sm:$0xff]
    %v428 = vld [vmem:[#allocation8 + $0x90] sm:$0xff]
    %v429 = vld [vmem:[#allocation8 + $0x98] sm:$0xff]
    %v430 = vld [vmem:[#allocation8 + $0xa0] sm:$0xff]
    %v431 = vld [vmem:[#allocation8 + $0xa8] sm:$0xff]
    %v432 = vld [vmem:[#allocation8 + $0xb0] sm:$0xff]
    %v433 = vld [vmem:[#allocation8 + $0xb8] sm:$0xff]
    %v434 = vld [vmem:[#allocation8 + $0xc0] sm:$0xff]
    %v435 = vld [vmem:[#allocation8 + $0xc8] sm:$0xff]
    %v436 = vld [vmem:[#allocation8 + $0xd0] sm:$0xff]
    %v437 = vld [vmem:[#allocation8 + $0xd8] sm:$0xff]
    %v438 = vld [vmem:[#allocation8 + $0xe0] sm:$0xff]
    %v439 = vld [vmem:[#allocation8 + $0xe8] sm:$0xff]
    %v440 = vld [vmem:[#allocation8 + $0xf0] sm:$0xff]
    %v441 = vld [vmem:[#allocation8 + $0xf8] sm:$0xff]
    %v442 = vld [vmem:[%s5] sm:$0x3]
    %v444 = vlaneseq
    %v445 = vshrl.u32 %v444, 7
    %v446 = vsub.s32 0, %v445
    %v447 = vrot.slane %v442, %v446
    %v448 = vlaneseq
    %v449 = vshrl.u32 %v448, 7
    %v450 = vsub.s32 1, %v449
    %v451 = vrot.slane %v442, %v450
    %v486 = vunpack.c.l.b16 %v410
    %v487 = vunpack.c.h.b16 %v410
    %v488 = vunpack.c.l.b16 %v411
    %v489 = vunpack.c.h.b16 %v411
    %v490 = vunpack.c.l.b16 %v412
    %v491 = vunpack.c.h.b16 %v412
    %v492 = vunpack.c.l.b16 %v413
    %v493 = vunpack.c.h.b16 %v413
    %v494 = vunpack.c.l.b16 %v414
    %v495 = vunpack.c.h.b16 %v414
    %v496 = vunpack.c.l.b16 %v415
    %v497 = vunpack.c.h.b16 %v415
    %v498 = vunpack.c.l.b16 %v416
    %v499 = vunpack.c.h.b16 %v416
    %v500 = vunpack.c.l.b16 %v417
    %v501 = vunpack.c.h.b16 %v417
    %v502 = vunpack.c.l.b16 %v418
    %v503 = vunpack.c.h.b16 %v418
    %v504 = vunpack.c.l.b16 %v419
    %v505 = vunpack.c.h.b16 %v419
    %v506 = vunpack.c.l.b16 %v420
    %v507 = vunpack.c.h.b16 %v420
    %v508 = vunpack.c.l.b16 %v421
    %v509 = vunpack.c.h.b16 %v421
    %v510 = vunpack.c.l.b16 %v422
    %v511 = vunpack.c.h.b16 %v422
    %v512 = vunpack.c.l.b16 %v423
    %v513 = vunpack.c.h.b16 %v423
    %v514 = vunpack.c.l.b16 %v424
    %v515 = vunpack.c.h.b16 %v424
    %v516 = vunpack.c.l.b16 %v425
    %v517 = vunpack.c.h.b16 %v425
    %v518 = vunpack.c.l.b16 %v426
    %v519 = vunpack.c.h.b16 %v426
    %v520 = vunpack.c.l.b16 %v427
    %v521 = vunpack.c.h.b16 %v427
    %v522 = vunpack.c.l.b16 %v428
    %v523 = vunpack.c.h.b16 %v428
    %v524 = vunpack.c.l.b16 %v429
    %v525 = vunpack.c.h.b16 %v429
    %v526 = vunpack.c.l.b16 %v430
    %v527 = vunpack.c.h.b16 %v430
    %v528 = vunpack.c.l.b16 %v431
    %v529 = vunpack.c.h.b16 %v431
    %v530 = vunpack.c.l.b16 %v432
    %v531 = vunpack.c.h.b16 %v432
    %v532 = vunpack.c.l.b16 %v433
    %v533 = vunpack.c.h.b16 %v433
    %v534 = vunpack.c.l.b16 %v434
    %v535 = vunpack.c.h.b16 %v434
    %v536 = vunpack.c.l.b16 %v435
    %v537 = vunpack.c.h.b16 %v435
    %v538 = vunpack.c.l.b16 %v436
    %v539 = vunpack.c.h.b16 %v436
    %v540 = vunpack.c.l.b16 %v437
    %v541 = vunpack.c.h.b16 %v437
    %v542 = vunpack.c.l.b16 %v438
    %v543 = vunpack.c.h.b16 %v438
    %v544 = vunpack.c.l.b16 %v439
    %v545 = vunpack.c.h.b16 %v439
    %v546 = vunpack.c.l.b16 %v440
    %v547 = vunpack.c.h.b16 %v440
    %v548 = vunpack.c.l.b16 %v441
    %v549 = vunpack.c.h.b16 %v441
    %v550 = vpack.c.b16 %v488, %v486
    %v551 = vpack.c.b16 %v489, %v487
    %v552 = vpack.c.b16 %v492, %v490
    %v553 = vpack.c.b16 %v493, %v491
    %v554 = vpack.c.b16 %v496, %v494
    %v555 = vpack.c.b16 %v497, %v495
    %v556 = vpack.c.b16 %v500, %v498
    %v557 = vpack.c.b16 %v501, %v499
    %v558 = vpack.c.b16 %v504, %v502
    %v559 = vpack.c.b16 %v505, %v503
    %v560 = vpack.c.b16 %v508, %v506
    %v561 = vpack.c.b16 %v509, %v507
    %v562 = vpack.c.b16 %v512, %v510
    %v563 = vpack.c.b16 %v513, %v511
    %v564 = vpack.c.b16 %v516, %v514
    %v565 = vpack.c.b16 %v517, %v515
    %v566 = vpack.c.b16 %v520, %v518
    %v567 = vpack.c.b16 %v521, %v519
    %v568 = vpack.c.b16 %v524, %v522
    %v569 = vpack.c.b16 %v525, %v523
    %v570 = vpack.c.b16 %v528, %v526
    %v571 = vpack.c.b16 %v529, %v527
    %v572 = vpack.c.b16 %v532, %v530
    %v573 = vpack.c.b16 %v533, %v531
    %v574 = vpack.c.b16 %v536, %v534
    %v575 = vpack.c.b16 %v537, %v535
    %v576 = vpack.c.b16 %v540, %v538
    %v577 = vpack.c.b16 %v541, %v539
    %v578 = vpack.c.b16 %v544, %v542
    %v579 = vpack.c.b16 %v545, %v543
    %v580 = vpack.c.b16 %v548, %v546
    %v581 = vpack.c.b16 %v549, %v547
    %614 = vmatprep.subr.bf16.mxu0 %v565
    %615 = vmatpush1.bf16.msra.mxu0 %v564
    %616 = vmatprep.subr.bf16.mxu0 %v563
    %617 = vmatpush1.bf16.msra.mxu0 %v562
    %618 = vmatprep.subr.bf16.mxu0 %v561
    %619 = vmatpush1.bf16.msra.mxu0 %v560
    %620 = vmatprep.subr.bf16.mxu0 %v559
    %621 = vmatpush1.bf16.msra.mxu0 %v558
    %622 = vmatprep.subr.bf16.mxu0 %v557
    %623 = vmatpush1.bf16.msra.mxu0 %v556
    %624 = vmatprep.subr.bf16.mxu0 %v555
    %625 = vmatpush1.bf16.msra.mxu0 %v554
    %626 = vmatprep.subr.bf16.mxu0 %v553
    %627 = vmatpush1.bf16.msra.mxu0 %v552
    %628 = vmatprep.subr.bf16.mxu0 %v551
    %629 = vmatpush1.bf16.msra.mxu0 %v550
    %630 = vmatprep.subr.bf16.mxu0 %v581
    %631 = vmatpush2.bf16.msra.mxu0 %v580
    %632 = vmatprep.subr.bf16.mxu0 %v579
    %633 = vmatpush2.bf16.msra.mxu0 %v578
    %634 = vmatprep.subr.bf16.mxu0 %v577
    %635 = vmatpush2.bf16.msra.mxu0 %v576
    %636 = vmatprep.subr.bf16.mxu0 %v575
    %637 = vmatpush2.bf16.msra.mxu0 %v574
    %638 = vmatprep.subr.bf16.mxu0 %v573
    %639 = vmatpush2.bf16.msra.mxu0 %v572
    %640 = vmatprep.subr.bf16.mxu0 %v571
    %641 = vmatpush2.bf16.msra.mxu0 %v570
    %642 = vmatprep.subr.bf16.mxu0 %v569
    %643 = vmatpush2.bf16.msra.mxu0 %v568
    %644 = vmatprep.subr.bf16.mxu0 %v567
    %645 = vmatpush2.bf16.msra.mxu0 %v566
    %646 = vmatprep.mubr.bf16.mxu0 %v409
    %647 = vmatmul.mubr.bf16.gmra.mxu0 %v408
    %v648 = vpop.f32.mrf.mxu0
    %v649 = vadd.f32 %v447, %v648
    %v650 = vpop.f32.mrf.mxu0
    %v651 = vadd.f32 %v451, %v650
    %v652 = vpop.f32.mrf.mxu0
    %v653 = vadd.f32 %v447, %v652
    %v654 = vpop.f32.mrf.mxu0
    %v655 = vadd.f32 %v451, %v654
    %656 = vdwg.mxu0
    %v657 = vmax.f32 %v649, 0.0
    %v658 = vmax.f32 %v651, 0.0
    %v659 = vmax.f32 %v653, 0.0
    %v660 = vmax.f32 %v655, 0.0
    %v661 = vpack.c.bf16 %v659, %v657
    %v662 = vpack.c.bf16 %v660, %v658
    %v663 = vld [vmem:[#allocation10] sm:$0xff]
    %v664 = vld [vmem:[#allocation10 + $0x8] sm:$0xff]
    %v665 = vld [vmem:[#allocation10 + $0x10] sm:$0xff]
    %v666 = vld [vmem:[#allocation10 + $0x18] sm:$0xff]
    %v667 = vld [vmem:[#allocation10 + $0x20] sm:$0xff]
    %v668 = vld [vmem:[#allocation10 + $0x28] sm:$0xff]
    %v669 = vld [vmem:[#allocation10 + $0x30] sm:$0xff]
    %v670 = vld [vmem:[#allocation10 + $0x38] sm:$0xff]
    %v671 = vld [vmem:[#allocation10 + $0x40] sm:$0xff]
    %v672 = vld [vmem:[#allocation10 + $0x48] sm:$0xff]
    %v673 = vld [vmem:[#allocation10 + $0x50] sm:$0xff]
    %v674 = vld [vmem:[#allocation10 + $0x58] sm:$0xff]
    %v675 = vld [vmem:[#allocation10 + $0x60] sm:$0xff]
    %v676 = vld [vmem:[#allocation10 + $0x68] sm:$0xff]
    %v677 = vld [vmem:[#allocation10 + $0x70] sm:$0xff]
    %v678 = vld [vmem:[#allocation10 + $0x78] sm:$0xff]
    %v679 = vld [vmem:[#allocation10 + $0x80] sm:$0xff]
    %v680 = vld [vmem:[#allocation10 + $0x88] sm:$0xff]
    %v681 = vld [vmem:[#allocation10 + $0x90] sm:$0xff]
    %v682 = vld [vmem:[#allocation10 + $0x98] sm:$0xff]
    %v683 = vld [vmem:[#allocation10 + $0xa0] sm:$0xff]
    %v684 = vld [vmem:[#allocation10 + $0xa8] sm:$0xff]
    %v685 = vld [vmem:[#allocation10 + $0xb0] sm:$0xff]
    %v686 = vld [vmem:[#allocation10 + $0xb8] sm:$0xff]
    %v687 = vld [vmem:[#allocation10 + $0xc0] sm:$0xff]
    %v688 = vld [vmem:[#allocation10 + $0xc8] sm:$0xff]
    %v689 = vld [vmem:[#allocation10 + $0xd0] sm:$0xff]
    %v690 = vld [vmem:[#allocation10 + $0xd8] sm:$0xff]
    %v691 = vld [vmem:[#allocation10 + $0xe0] sm:$0xff]
    %v692 = vld [vmem:[#allocation10 + $0xe8] sm:$0xff]
    %v693 = vld [vmem:[#allocation10 + $0xf0] sm:$0xff]
    %v694 = vld [vmem:[#allocation10 + $0xf8] sm:$0xff]
    %v695 = vld [vmem:[%s7] sm:$0x3]
    %v697 = vlaneseq
    %v698 = vshrl.u32 %v697, 7
    %v699 = vsub.s32 0, %v698
    %v700 = vrot.slane %v695, %v699
    %v701 = vlaneseq
    %v702 = vshrl.u32 %v701, 7
    %v703 = vsub.s32 1, %v702
    %v704 = vrot.slane %v695, %v703
    %v739 = vunpack.c.l.b16 %v663
    %v740 = vunpack.c.h.b16 %v663
    %v741 = vunpack.c.l.b16 %v664
    %v742 = vunpack.c.h.b16 %v664
    %v743 = vunpack.c.l.b16 %v665
    %v744 = vunpack.c.h.b16 %v665
    %v745 = vunpack.c.l.b16 %v666
    %v746 = vunpack.c.h.b16 %v666
    %v747 = vunpack.c.l.b16 %v667
    %v748 = vunpack.c.h.b16 %v667
    %v749 = vunpack.c.l.b16 %v668
    %v750 = vunpack.c.h.b16 %v668
    %v751 = vunpack.c.l.b16 %v669
    %v752 = vunpack.c.h.b16 %v669
    %v753 = vunpack.c.l.b16 %v670
    %v754 = vunpack.c.h.b16 %v670
    %v755 = vunpack.c.l.b16 %v671
    %v756 = vunpack.c.h.b16 %v671
    %v757 = vunpack.c.l.b16 %v672
    %v758 = vunpack.c.h.b16 %v672
    %v759 = vunpack.c.l.b16 %v673
    %v760 = vunpack.c.h.b16 %v673
    %v761 = vunpack.c.l.b16 %v674
    %v762 = vunpack.c.h.b16 %v674
    %v763 = vunpack.c.l.b16 %v675
    %v764 = vunpack.c.h.b16 %v675
    %v765 = vunpack.c.l.b16 %v676
    %v766 = vunpack.c.h.b16 %v676
    %v767 = vunpack.c.l.b16 %v677
    %v768 = vunpack.c.h.b16 %v677
    %v769 = vunpack.c.l.b16 %v678
    %v770 = vunpack.c.h.b16 %v678
    %v771 = vunpack.c.l.b16 %v679
    %v772 = vunpack.c.h.b16 %v679
    %v773 = vunpack.c.l.b16 %v680
    %v774 = vunpack.c.h.b16 %v680
    %v775 = vunpack.c.l.b16 %v681
    %v776 = vunpack.c.h.b16 %v681
    %v777 = vunpack.c.l.b16 %v682
    %v778 = vunpack.c.h.b16 %v682
    %v779 = vunpack.c.l.b16 %v683
    %v780 = vunpack.c.h.b16 %v683
    %v781 = vunpack.c.l.b16 %v684
    %v782 = vunpack.c.h.b16 %v684
    %v783 = vunpack.c.l.b16 %v685
    %v784 = vunpack.c.h.b16 %v685
    %v785 = vunpack.c.l.b16 %v686
    %v786 = vunpack.c.h.b16 %v686
    %v787 = vunpack.c.l.b16 %v687
    %v788 = vunpack.c.h.b16 %v687
    %v789 = vunpack.c.l.b16 %v688
    %v790 = vunpack.c.h.b16 %v688
    %v791 = vunpack.c.l.b16 %v689
    %v792 = vunpack.c.h.b16 %v689
    %v793 = vunpack.c.l.b16 %v690
    %v794 = vunpack.c.h.b16 %v690
    %v795 = vunpack.c.l.b16 %v691
    %v796 = vunpack.c.h.b16 %v691
    %v797 = vunpack.c.l.b16 %v692
    %v798 = vunpack.c.h.b16 %v692
    %v799 = vunpack.c.l.b16 %v693
    %v800 = vunpack.c.h.b16 %v693
    %v801 = vunpack.c.l.b16 %v694
    %v802 = vunpack.c.h.b16 %v694
    %v803 = vpack.c.b16 %v741, %v739
    %v804 = vpack.c.b16 %v742, %v740
    %v805 = vpack.c.b16 %v745, %v743
    %v806 = vpack.c.b16 %v746, %v744
    %v807 = vpack.c.b16 %v749, %v747
    %v808 = vpack.c.b16 %v750, %v748
    %v809 = vpack.c.b16 %v753, %v751
    %v810 = vpack.c.b16 %v754, %v752
    %v811 = vpack.c.b16 %v757, %v755
    %v812 = vpack.c.b16 %v758, %v756
    %v813 = vpack.c.b16 %v761, %v759
    %v814 = vpack.c.b16 %v762, %v760
    %v815 = vpack.c.b16 %v765, %v763
    %v816 = vpack.c.b16 %v766, %v764
    %v817 = vpack.c.b16 %v769, %v767
    %v818 = vpack.c.b16 %v770, %v768
    %v819 = vpack.c.b16 %v773, %v771
    %v820 = vpack.c.b16 %v774, %v772
    %v821 = vpack.c.b16 %v777, %v775
    %v822 = vpack.c.b16 %v778, %v776
    %v823 = vpack.c.b16 %v781, %v779
    %v824 = vpack.c.b16 %v782, %v780
    %v825 = vpack.c.b16 %v785, %v783
    %v826 = vpack.c.b16 %v786, %v784
    %v827 = vpack.c.b16 %v789, %v787
    %v828 = vpack.c.b16 %v790, %v788
    %v829 = vpack.c.b16 %v793, %v791
    %v830 = vpack.c.b16 %v794, %v792
    %v831 = vpack.c.b16 %v797, %v795
    %v832 = vpack.c.b16 %v798, %v796
    %v833 = vpack.c.b16 %v801, %v799
    %v834 = vpack.c.b16 %v802, %v800
    %867 = vmatprep.subr.bf16.mxu0 %v818
    %868 = vmatpush1.bf16.msra.mxu0 %v817
    %869 = vmatprep.subr.bf16.mxu0 %v816
    %870 = vmatpush1.bf16.msra.mxu0 %v815
    %871 = vmatprep.subr.bf16.mxu0 %v814
    %872 = vmatpush1.bf16.msra.mxu0 %v813
    %873 = vmatprep.subr.bf16.mxu0 %v812
    %874 = vmatpush1.bf16.msra.mxu0 %v811
    %875 = vmatprep.subr.bf16.mxu0 %v810
    %876 = vmatpush1.bf16.msra.mxu0 %v809
    %877 = vmatprep.subr.bf16.mxu0 %v808
    %878 = vmatpush1.bf16.msra.mxu0 %v807
    %879 = vmatprep.subr.bf16.mxu0 %v806
    %880 = vmatpush1.bf16.msra.mxu0 %v805
    %881 = vmatprep.subr.bf16.mxu0 %v804
    %882 = vmatpush1.bf16.msra.mxu0 %v803
    %883 = vmatprep.subr.bf16.mxu0 %v834
    %884 = vmatpush2.bf16.msra.mxu0 %v833
    %885 = vmatprep.subr.bf16.mxu0 %v832
    %886 = vmatpush2.bf16.msra.mxu0 %v831
    %887 = vmatprep.subr.bf16.mxu0 %v830
    %888 = vmatpush2.bf16.msra.mxu0 %v829
    %889 = vmatprep.subr.bf16.mxu0 %v828
    %890 = vmatpush2.bf16.msra.mxu0 %v827
    %891 = vmatprep.subr.bf16.mxu0 %v826
    %892 = vmatpush2.bf16.msra.mxu0 %v825
    %893 = vmatprep.subr.bf16.mxu0 %v824
    %894 = vmatpush2.bf16.msra.mxu0 %v823
    %895 = vmatprep.subr.bf16.mxu0 %v822
    %896 = vmatpush2.bf16.msra.mxu0 %v821
    %897 = vmatprep.subr.bf16.mxu0 %v820
    %898 = vmatpush2.bf16.msra.mxu0 %v819
    %899 = vmatprep.mubr.bf16.mxu0 %v662
    %900 = vmatmul.mubr.bf16.gmra.mxu0 %v661
    %v901 = vpop.f32.mrf.mxu0
    %v902 = vadd.f32 %v700, %v901
    %v903 = vpop.f32.mrf.mxu0
    %v904 = vadd.f32 %v704, %v903
    %v905 = vpop.f32.mrf.mxu0
    %v906 = vadd.f32 %v700, %v905
    %v907 = vpop.f32.mrf.mxu0
    %v908 = vadd.f32 %v704, %v907
    %909 = vdwg.mxu0
    %v910 = vmax.f32 %v902, 0.0
    %v911 = vmax.f32 %v904, 0.0
    %v912 = vmax.f32 %v906, 0.0
    %v913 = vmax.f32 %v908, 0.0
    %v914 = vpack.c.bf16 %v912, %v910
    %v915 = vpack.c.bf16 %v913, %v911
    %v916 = vld [vmem:[#allocation11] sm:$0xff]
    %v917 = vld [vmem:[#allocation11 + $0x8] sm:$0xff]
    %v918 = vld [vmem:[#allocation11 + $0x10] sm:$0xff]
    %v919 = vld [vmem:[#allocation11 + $0x18] sm:$0xff]
    %v920 = vld [vmem:[#allocation11 + $0x20] sm:$0xff]
    %v921 = vld [vmem:[#allocation11 + $0x28] sm:$0xff]
    %v922 = vld [vmem:[#allocation11 + $0x30] sm:$0xff]
    %v923 = vld [vmem:[#allocation11 + $0x38] sm:$0xff]
    %v924 = vld [vmem:[#allocation11 + $0x40] sm:$0xff]
    %v925 = vld [vmem:[#allocation11 + $0x48] sm:$0xff]
    %v926 = vld [vmem:[#allocation11 + $0x50] sm:$0xff]
    %v927 = vld [vmem:[#allocation11 + $0x58] sm:$0xff]
    %v928 = vld [vmem:[#allocation11 + $0x60] sm:$0xff]
    %v929 = vld [vmem:[#allocation11 + $0x68] sm:$0xff]
    %v930 = vld [vmem:[#allocation11 + $0x70] sm:$0xff]
    %v931 = vld [vmem:[#allocation11 + $0x78] sm:$0xff]
    %v932 = vld [vmem:[#allocation11 + $0x80] sm:$0xff]
    %v933 = vld [vmem:[#allocation11 + $0x88] sm:$0xff]
    %v934 = vld [vmem:[#allocation11 + $0x90] sm:$0xff]
    %v935 = vld [vmem:[#allocation11 + $0x98] sm:$0xff]
    %v936 = vld [vmem:[#allocation11 + $0xa0] sm:$0xff]
    %v937 = vld [vmem:[#allocation11 + $0xa8] sm:$0xff]
    %v938 = vld [vmem:[#allocation11 + $0xb0] sm:$0xff]
    %v939 = vld [vmem:[#allocation11 + $0xb8] sm:$0xff]
    %v940 = vld [vmem:[#allocation11 + $0xc0] sm:$0xff]
    %v941 = vld [vmem:[#allocation11 + $0xc8] sm:$0xff]
    %v942 = vld [vmem:[#allocation11 + $0xd0] sm:$0xff]
    %v943 = vld [vmem:[#allocation11 + $0xd8] sm:$0xff]
    %v944 = vld [vmem:[#allocation11 + $0xe0] sm:$0xff]
    %v945 = vld [vmem:[#allocation11 + $0xe8] sm:$0xff]
    %v946 = vld [vmem:[#allocation11 + $0xf0] sm:$0xff]
    %v947 = vld [vmem:[#allocation11 + $0xf8] sm:$0xff]
    %v948 = vld [vmem:[%s9] sm:$0x3]
    %v950 = vlaneseq
    %v951 = vshrl.u32 %v950, 7
    %v952 = vsub.s32 0, %v951
    %v953 = vrot.slane %v948, %v952
    %v954 = vlaneseq
    %v955 = vshrl.u32 %v954, 7
    %v956 = vsub.s32 1, %v955
    %v957 = vrot.slane %v948, %v956
    %v992 = vunpack.c.l.b16 %v916
    %v993 = vunpack.c.h.b16 %v916
    %v994 = vunpack.c.l.b16 %v917
    %v995 = vunpack.c.h.b16 %v917
    %v996 = vunpack.c.l.b16 %v918
    %v997 = vunpack.c.h.b16 %v918
    %v998 = vunpack.c.l.b16 %v919
    %v999 = vunpack.c.h.b16 %v919
    %v1000 = vunpack.c.l.b16 %v920
    %v1001 = vunpack.c.h.b16 %v920
    %v1002 = vunpack.c.l.b16 %v921
    %v1003 = vunpack.c.h.b16 %v921
    %v1004 = vunpack.c.l.b16 %v922
    %v1005 = vunpack.c.h.b16 %v922
    %v1006 = vunpack.c.l.b16 %v923
    %v1007 = vunpack.c.h.b16 %v923
    %v1008 = vunpack.c.l.b16 %v924
    %v1009 = vunpack.c.h.b16 %v924
    %v1010 = vunpack.c.l.b16 %v925
    %v1011 = vunpack.c.h.b16 %v925
    %v1012 = vunpack.c.l.b16 %v926
    %v1013 = vunpack.c.h.b16 %v926
    %v1014 = vunpack.c.l.b16 %v927
    %v1015 = vunpack.c.h.b16 %v927
    %v1016 = vunpack.c.l.b16 %v928
    %v1017 = vunpack.c.h.b16 %v928
    %v1018 = vunpack.c.l.b16 %v929
    %v1019 = vunpack.c.h.b16 %v929
    %v1020 = vunpack.c.l.b16 %v930
    %v1021 = vunpack.c.h.b16 %v930
    %v1022 = vunpack.c.l.b16 %v931
    %v1023 = vunpack.c.h.b16 %v931
    %v1024 = vunpack.c.l.b16 %v932
    %v1025 = vunpack.c.h.b16 %v932
    %v1026 = vunpack.c.l.b16 %v933
    %v1027 = vunpack.c.h.b16 %v933
    %v1028 = vunpack.c.l.b16 %v934
    %v1029 = vunpack.c.h.b16 %v934
    %v1030 = vunpack.c.l.b16 %v935
    %v1031 = vunpack.c.h.b16 %v935
    %v1032 = vunpack.c.l.b16 %v936
    %v1033 = vunpack.c.h.b16 %v936
    %v1034 = vunpack.c.l.b16 %v937
    %v1035 = vunpack.c.h.b16 %v937
    %v1036 = vunpack.c.l.b16 %v938
    %v1037 = vunpack.c.h.b16 %v938
    %v1038 = vunpack.c.l.b16 %v939
    %v1039 = vunpack.c.h.b16 %v939
    %v1040 = vunpack.c.l.b16 %v940
    %v1041 = vunpack.c.h.b16 %v940
    %v1042 = vunpack.c.l.b16 %v941
    %v1043 = vunpack.c.h.b16 %v941
    %v1044 = vunpack.c.l.b16 %v942
    %v1045 = vunpack.c.h.b16 %v942
    %v1046 = vunpack.c.l.b16 %v943
    %v1047 = vunpack.c.h.b16 %v943
    %v1048 = vunpack.c.l.b16 %v944
    %v1049 = vunpack.c.h.b16 %v944
    %v1050 = vunpack.c.l.b16 %v945
    %v1051 = vunpack.c.h.b16 %v945
    %v1052 = vunpack.c.l.b16 %v946
    %v1053 = vunpack.c.h.b16 %v946
    %v1054 = vunpack.c.l.b16 %v947
    %v1055 = vunpack.c.h.b16 %v947
    %v1056 = vpack.c.b16 %v994, %v992
    %v1057 = vpack.c.b16 %v995, %v993
    %v1058 = vpack.c.b16 %v998, %v996
    %v1059 = vpack.c.b16 %v999, %v997
    %v1060 = vpack.c.b16 %v1002, %v1000
    %v1061 = vpack.c.b16 %v1003, %v1001
    %v1062 = vpack.c.b16 %v1006, %v1004
    %v1063 = vpack.c.b16 %v1007, %v1005
    %v1064 = vpack.c.b16 %v1010, %v1008
    %v1065 = vpack.c.b16 %v1011, %v1009
    %v1066 = vpack.c.b16 %v1014, %v1012
    %v1067 = vpack.c.b16 %v1015, %v1013
    %v1068 = vpack.c.b16 %v1018, %v1016
    %v1069 = vpack.c.b16 %v1019, %v1017
    %v1070 = vpack.c.b16 %v1022, %v1020
    %v1071 = vpack.c.b16 %v1023, %v1021
    %v1072 = vpack.c.b16 %v1026, %v1024
    %v1073 = vpack.c.b16 %v1027, %v1025
    %v1074 = vpack.c.b16 %v1030, %v1028
    %v1075 = vpack.c.b16 %v1031, %v1029
    %v1076 = vpack.c.b16 %v1034, %v1032
    %v1077 = vpack.c.b16 %v1035, %v1033
    %v1078 = vpack.c.b16 %v1038, %v1036
    %v1079 = vpack.c.b16 %v1039, %v1037
    %v1080 = vpack.c.b16 %v1042, %v1040
    %v1081 = vpack.c.b16 %v1043, %v1041
    %v1082 = vpack.c.b16 %v1046, %v1044
    %v1083 = vpack.c.b16 %v1047, %v1045
    %v1084 = vpack.c.b16 %v1050, %v1048
    %v1085 = vpack.c.b16 %v1051, %v1049
    %v1086 = vpack.c.b16 %v1054, %v1052
    %v1087 = vpack.c.b16 %v1055, %v1053
    %1120 = vmatprep.subr.bf16.mxu0 %v1071
    %1121 = vmatpush1.bf16.msra.mxu0 %v1070
    %1122 = vmatprep.subr.bf16.mxu0 %v1069
    %1123 = vmatpush1.bf16.msra.mxu0 %v1068
    %1124 = vmatprep.subr.bf16.mxu0 %v1067
    %1125 = vmatpush1.bf16.msra.mxu0 %v1066
    %1126 = vmatprep.subr.bf16.mxu0 %v1065
    %1127 = vmatpush1.bf16.msra.mxu0 %v1064
    %1128 = vmatprep.subr.bf16.mxu0 %v1063
    %1129 = vmatpush1.bf16.msra.mxu0 %v1062
    %1130 = vmatprep.subr.bf16.mxu0 %v1061
    %1131 = vmatpush1.bf16.msra.mxu0 %v1060
    %1132 = vmatprep.subr.bf16.mxu0 %v1059
    %1133 = vmatpush1.bf16.msra.mxu0 %v1058
    %1134 = vmatprep.subr.bf16.mxu0 %v1057
    %1135 = vmatpush1.bf16.msra.mxu0 %v1056
    %1136 = vmatprep.subr.bf16.mxu0 %v1087
    %1137 = vmatpush2.bf16.msra.mxu0 %v1086
    %1138 = vmatprep.subr.bf16.mxu0 %v1085
    %1139 = vmatpush2.bf16.msra.mxu0 %v1084
    %1140 = vmatprep.subr.bf16.mxu0 %v1083
    %1141 = vmatpush2.bf16.msra.mxu0 %v1082
    %1142 = vmatprep.subr.bf16.mxu0 %v1081
    %1143 = vmatpush2.bf16.msra.mxu0 %v1080
    %1144 = vmatprep.subr.bf16.mxu0 %v1079
    %1145 = vmatpush2.bf16.msra.mxu0 %v1078
    %1146 = vmatprep.subr.bf16.mxu0 %v1077
    %1147 = vmatpush2.bf16.msra.mxu0 %v1076
    %1148 = vmatprep.subr.bf16.mxu0 %v1075
    %1149 = vmatpush2.bf16.msra.mxu0 %v1074
    %1150 = vmatprep.subr.bf16.mxu0 %v1073
    %1151 = vmatpush2.bf16.msra.mxu0 %v1072
    %1152 = vmatprep.mubr.bf16.mxu0 %v915
    %1153 = vmatmul.mubr.bf16.gmra.mxu0 %v914
    %v1154 = vpop.f32.mrf.mxu0
    %v1155 = vadd.f32 %v953, %v1154
    %v1156 = vpop.f32.mrf.mxu0
    %v1157 = vadd.f32 %v957, %v1156
    %v1158 = vpop.f32.mrf.mxu0
    %v1159 = vadd.f32 %v953, %v1158
    %v1160 = vpop.f32.mrf.mxu0
    %v1161 = vadd.f32 %v957, %v1160
    %1162 = vdwg.mxu0
    %v1163 = vmax.f32 %v1155, 0.0
    %v1164 = vmax.f32 %v1157, 0.0
    %v1165 = vmax.f32 %v1159, 0.0
    %v1166 = vmax.f32 %v1161, 0.0
    %v1167 = vpack.c.bf16 %v1165, %v1163
    %v1168 = vpack.c.bf16 %v1166, %v1164
    %v1169 = vld [vmem:[#allocation13] sm:$0xff]
    %v1170 = vld [vmem:[#allocation13 + $0x8] sm:$0xff]
    %v1171 = vld [vmem:[#allocation13 + $0x10] sm:$0xff]
    %v1172 = vld [vmem:[#allocation13 + $0x18] sm:$0xff]
    %v1173 = vld [vmem:[#allocation13 + $0x20] sm:$0xff]
    %v1174 = vld [vmem:[#allocation13 + $0x28] sm:$0xff]
    %v1175 = vld [vmem:[#allocation13 + $0x30] sm:$0xff]
    %v1176 = vld [vmem:[#allocation13 + $0x38] sm:$0xff]
    %v1177 = vld [vmem:[#allocation13 + $0x40] sm:$0xff]
    %v1178 = vld [vmem:[#allocation13 + $0x48] sm:$0xff]
    %v1179 = vld [vmem:[#allocation13 + $0x50] sm:$0xff]
    %v1180 = vld [vmem:[#allocation13 + $0x58] sm:$0xff]
    %v1181 = vld [vmem:[#allocation13 + $0x60] sm:$0xff]
    %v1182 = vld [vmem:[#allocation13 + $0x68] sm:$0xff]
    %v1183 = vld [vmem:[#allocation13 + $0x70] sm:$0xff]
    %v1184 = vld [vmem:[#allocation13 + $0x78] sm:$0xff]
    %v1185 = vld [vmem:[#allocation13 + $0x80] sm:$0xff]
    %v1186 = vld [vmem:[#allocation13 + $0x88] sm:$0xff]
    %v1187 = vld [vmem:[#allocation13 + $0x90] sm:$0xff]
    %v1188 = vld [vmem:[#allocation13 + $0x98] sm:$0xff]
    %v1189 = vld [vmem:[#allocation13 + $0xa0] sm:$0xff]
    %v1190 = vld [vmem:[#allocation13 + $0xa8] sm:$0xff]
    %v1191 = vld [vmem:[#allocation13 + $0xb0] sm:$0xff]
    %v1192 = vld [vmem:[#allocation13 + $0xb8] sm:$0xff]
    %v1193 = vld [vmem:[#allocation13 + $0xc0] sm:$0xff]
    %v1194 = vld [vmem:[#allocation13 + $0xc8] sm:$0xff]
    %v1195 = vld [vmem:[#allocation13 + $0xd0] sm:$0xff]
    %v1196 = vld [vmem:[#allocation13 + $0xd8] sm:$0xff]
    %v1197 = vld [vmem:[#allocation13 + $0xe0] sm:$0xff]
    %v1198 = vld [vmem:[#allocation13 + $0xe8] sm:$0xff]
    %v1199 = vld [vmem:[#allocation13 + $0xf0] sm:$0xff]
    %v1200 = vld [vmem:[#allocation13 + $0xf8] sm:$0xff]
    %v1201 = vld [vmem:[%s11] sm:$0x3]
    %v1203 = vlaneseq
    %v1204 = vshrl.u32 %v1203, 7
    %v1205 = vsub.s32 0, %v1204
    %v1206 = vrot.slane %v1201, %v1205
    %v1207 = vlaneseq
    %v1208 = vshrl.u32 %v1207, 7
    %v1209 = vsub.s32 1, %v1208
    %v1210 = vrot.slane %v1201, %v1209
    %v1245 = vunpack.c.l.b16 %v1169
    %v1246 = vunpack.c.h.b16 %v1169
    %v1247 = vunpack.c.l.b16 %v1170
    %v1248 = vunpack.c.h.b16 %v1170
    %v1249 = vunpack.c.l.b16 %v1171
    %v1250 = vunpack.c.h.b16 %v1171
    %v1251 = vunpack.c.l.b16 %v1172
    %v1252 = vunpack.c.h.b16 %v1172
    %v1253 = vunpack.c.l.b16 %v1173
    %v1254 = vunpack.c.h.b16 %v1173
    %v1255 = vunpack.c.l.b16 %v1174
    %v1256 = vunpack.c.h.b16 %v1174
    %v1257 = vunpack.c.l.b16 %v1175
    %v1258 = vunpack.c.h.b16 %v1175
    %v1259 = vunpack.c.l.b16 %v1176
    %v1260 = vunpack.c.h.b16 %v1176
    %v1261 = vunpack.c.l.b16 %v1177
    %v1262 = vunpack.c.h.b16 %v1177
    %v1263 = vunpack.c.l.b16 %v1178
    %v1264 = vunpack.c.h.b16 %v1178
    %v1265 = vunpack.c.l.b16 %v1179
    %v1266 = vunpack.c.h.b16 %v1179
    %v1267 = vunpack.c.l.b16 %v1180
    %v1268 = vunpack.c.h.b16 %v1180
    %v1269 = vunpack.c.l.b16 %v1181
    %v1270 = vunpack.c.h.b16 %v1181
    %v1271 = vunpack.c.l.b16 %v1182
    %v1272 = vunpack.c.h.b16 %v1182
    %v1273 = vunpack.c.l.b16 %v1183
    %v1274 = vunpack.c.h.b16 %v1183
    %v1275 = vunpack.c.l.b16 %v1184
    %v1276 = vunpack.c.h.b16 %v1184
    %v1277 = vunpack.c.l.b16 %v1185
    %v1278 = vunpack.c.h.b16 %v1185
    %v1279 = vunpack.c.l.b16 %v1186
    %v1280 = vunpack.c.h.b16 %v1186
    %v1281 = vunpack.c.l.b16 %v1187
    %v1282 = vunpack.c.h.b16 %v1187
    %v1283 = vunpack.c.l.b16 %v1188
    %v1284 = vunpack.c.h.b16 %v1188
    %v1285 = vunpack.c.l.b16 %v1189
    %v1286 = vunpack.c.h.b16 %v1189
    %v1287 = vunpack.c.l.b16 %v1190
    %v1288 = vunpack.c.h.b16 %v1190
    %v1289 = vunpack.c.l.b16 %v1191
    %v1290 = vunpack.c.h.b16 %v1191
    %v1291 = vunpack.c.l.b16 %v1192
    %v1292 = vunpack.c.h.b16 %v1192
    %v1293 = vunpack.c.l.b16 %v1193
    %v1294 = vunpack.c.h.b16 %v1193
    %v1295 = vunpack.c.l.b16 %v1194
    %v1296 = vunpack.c.h.b16 %v1194
    %v1297 = vunpack.c.l.b16 %v1195
    %v1298 = vunpack.c.h.b16 %v1195
    %v1299 = vunpack.c.l.b16 %v1196
    %v1300 = vunpack.c.h.b16 %v1196
    %v1301 = vunpack.c.l.b16 %v1197
    %v1302 = vunpack.c.h.b16 %v1197
    %v1303 = vunpack.c.l.b16 %v1198
    %v1304 = vunpack.c.h.b16 %v1198
    %v1305 = vunpack.c.l.b16 %v1199
    %v1306 = vunpack.c.h.b16 %v1199
    %v1307 = vunpack.c.l.b16 %v1200
    %v1308 = vunpack.c.h.b16 %v1200
    %v1309 = vpack.c.b16 %v1247, %v1245
    %v1310 = vpack.c.b16 %v1248, %v1246
    %v1311 = vpack.c.b16 %v1251, %v1249
    %v1312 = vpack.c.b16 %v1252, %v1250
    %v1313 = vpack.c.b16 %v1255, %v1253
    %v1314 = vpack.c.b16 %v1256, %v1254
    %v1315 = vpack.c.b16 %v1259, %v1257
    %v1316 = vpack.c.b16 %v1260, %v1258
    %v1317 = vpack.c.b16 %v1263, %v1261
    %v1318 = vpack.c.b16 %v1264, %v1262
    %v1319 = vpack.c.b16 %v1267, %v1265
    %v1320 = vpack.c.b16 %v1268, %v1266
    %v1321 = vpack.c.b16 %v1271, %v1269
    %v1322 = vpack.c.b16 %v1272, %v1270
    %v1323 = vpack.c.b16 %v1275, %v1273
    %v1324 = vpack.c.b16 %v1276, %v1274
    %v1325 = vpack.c.b16 %v1279, %v1277
    %v1326 = vpack.c.b16 %v1280, %v1278
    %v1327 = vpack.c.b16 %v1283, %v1281
    %v1328 = vpack.c.b16 %v1284, %v1282
    %v1329 = vpack.c.b16 %v1287, %v1285
    %v1330 = vpack.c.b16 %v1288, %v1286
    %v1331 = vpack.c.b16 %v1291, %v1289
    %v1332 = vpack.c.b16 %v1292, %v1290
    %v1333 = vpack.c.b16 %v1295, %v1293
    %v1334 = vpack.c.b16 %v1296, %v1294
    %v1335 = vpack.c.b16 %v1299, %v1297
    %v1336 = vpack.c.b16 %v1300, %v1298
    %v1337 = vpack.c.b16 %v1303, %v1301
    %v1338 = vpack.c.b16 %v1304, %v1302
    %v1339 = vpack.c.b16 %v1307, %v1305
    %v1340 = vpack.c.b16 %v1308, %v1306
    %1373 = vmatprep.subr.bf16.mxu0 %v1324
    %1374 = vmatpush1.bf16.msra.mxu0 %v1323
    %1375 = vmatprep.subr.bf16.mxu0 %v1322
    %1376 = vmatpush1.bf16.msra.mxu0 %v1321
    %1377 = vmatprep.subr.bf16.mxu0 %v1320
    %1378 = vmatpush1.bf16.msra.mxu0 %v1319
    %1379 = vmatprep.subr.bf16.mxu0 %v1318
    %1380 = vmatpush1.bf16.msra.mxu0 %v1317
    %1381 = vmatprep.subr.bf16.mxu0 %v1316
    %1382 = vmatpush1.bf16.msra.mxu0 %v1315
    %1383 = vmatprep.subr.bf16.mxu0 %v1314
    %1384 = vmatpush1.bf16.msra.mxu0 %v1313
    %1385 = vmatprep.subr.bf16.mxu0 %v1312
    %1386 = vmatpush1.bf16.msra.mxu0 %v1311
    %1387 = vmatprep.subr.bf16.mxu0 %v1310
    %1388 = vmatpush1.bf16.msra.mxu0 %v1309
    %1389 = vmatprep.subr.bf16.mxu0 %v1340
    %1390 = vmatpush2.bf16.msra.mxu0 %v1339
    %1391 = vmatprep.subr.bf16.mxu0 %v1338
    %1392 = vmatpush2.bf16.msra.mxu0 %v1337
    %1393 = vmatprep.subr.bf16.mxu0 %v1336
    %1394 = vmatpush2.bf16.msra.mxu0 %v1335
    %1395 = vmatprep.subr.bf16.mxu0 %v1334
    %1396 = vmatpush2.bf16.msra.mxu0 %v1333
    %1397 = vmatprep.subr.bf16.mxu0 %v1332
    %1398 = vmatpush2.bf16.msra.mxu0 %v1331
    %1399 = vmatprep.subr.bf16.mxu0 %v1330
    %1400 = vmatpush2.bf16.msra.mxu0 %v1329
    %1401 = vmatprep.subr.bf16.mxu0 %v1328
    %1402 = vmatpush2.bf16.msra.mxu0 %v1327
    %1403 = vmatprep.subr.bf16.mxu0 %v1326
    %1404 = vmatpush2.bf16.msra.mxu0 %v1325
    %1405 = vmatprep.mubr.bf16.mxu0 %v1168
    %1406 = vmatmul.mubr.bf16.gmra.mxu0 %v1167
    %v1407 = vpop.f32.mrf.mxu0
    %v1408 = vadd.f32 %v1206, %v1407
    %v1409 = vpop.f32.mrf.mxu0
    %v1410 = vadd.f32 %v1210, %v1409
    %v1411 = vpop.f32.mrf.mxu0
    %v1412 = vadd.f32 %v1206, %v1411
    %v1413 = vpop.f32.mrf.mxu0
    %v1414 = vadd.f32 %v1210, %v1413
    %1415 = vdwg.mxu0
    %v1416 = vmax.f32 %v1408, 0.0
    %v1417 = vmax.f32 %v1410, 0.0
    %v1418 = vmax.f32 %v1412, 0.0
    %v1419 = vmax.f32 %v1414, 0.0
    %v1420 = vpack.c.bf16 %v1418, %v1416
    %v1421 = vpack.c.bf16 %v1419, %v1417
    %v1422 = vld [vmem:[#allocation14] sm:$0xff]
    %v1423 = vld [vmem:[#allocation14 + $0x8] sm:$0xff]
    %v1424 = vld [vmem:[#allocation14 + $0x10] sm:$0xff]
    %v1425 = vld [vmem:[#allocation14 + $0x18] sm:$0xff]
    %v1426 = vld [vmem:[#allocation14 + $0x20] sm:$0xff]
    %v1427 = vld [vmem:[#allocation14 + $0x28] sm:$0xff]
    %v1428 = vld [vmem:[#allocation14 + $0x30] sm:$0xff]
    %v1429 = vld [vmem:[#allocation14 + $0x38] sm:$0xff]
    %v1430 = vld [vmem:[#allocation16] sm:$0xff]
    %v1431 = vld [vmem:[#allocation16 + $0x8] sm:$0xff]
    %v1432 = vld [vmem:[#allocation16 + $0x10] sm:$0xff]
    %v1433 = vld [vmem:[#allocation16 + $0x18] sm:$0xff]
    %v1434 = vld [vmem:[#allocation16 + $0x20] sm:$0xff]
    %v1435 = vld [vmem:[#allocation16 + $0x28] sm:$0xff]
    %v1436 = vld [vmem:[#allocation16 + $0x30] sm:$0xff]
    %v1437 = vld [vmem:[#allocation16 + $0x38] sm:$0xff]
    %v1438 = vld [vmem:[#allocation16 + $0x40] sm:$0xff]
    %v1439 = vld [vmem:[#allocation16 + $0x48] sm:$0xff]
    %v1440 = vld [vmem:[#allocation16 + $0x50] sm:$0xff]
    %v1441 = vld [vmem:[#allocation16 + $0x58] sm:$0xff]
    %v1442 = vld [vmem:[#allocation16 + $0x60] sm:$0xff]
    %v1443 = vld [vmem:[#allocation16 + $0x68] sm:$0xff]
    %v1444 = vld [vmem:[#allocation16 + $0x70] sm:$0xff]
    %v1445 = vld [vmem:[#allocation16 + $0x78] sm:$0xff]
    %v1446 = vld [vmem:[#allocation16 + $0x80] sm:$0xff]
    %v1447 = vld [vmem:[#allocation16 + $0x88] sm:$0xff]
    %v1448 = vld [vmem:[#allocation16 + $0x90] sm:$0xff]
    %v1449 = vld [vmem:[#allocation16 + $0x98] sm:$0xff]
    %v1450 = vld [vmem:[#allocation16 + $0xa0] sm:$0xff]
    %v1451 = vld [vmem:[#allocation16 + $0xa8] sm:$0xff]
    %v1452 = vld [vmem:[#allocation16 + $0xb0] sm:$0xff]
    %v1453 = vld [vmem:[#allocation16 + $0xb8] sm:$0xff]
    %v1454 = vld [vmem:[#allocation16 + $0xc0] sm:$0xff]
    %v1455 = vld [vmem:[#allocation16 + $0xc8] sm:$0xff]
    %v1456 = vld [vmem:[#allocation16 + $0xd0] sm:$0xff]
    %v1457 = vld [vmem:[#allocation16 + $0xd8] sm:$0xff]
    %v1458 = vld [vmem:[#allocation16 + $0xe0] sm:$0xff]
    %v1459 = vld [vmem:[#allocation16 + $0xe8] sm:$0xff]
    %v1460 = vld [vmem:[#allocation16 + $0xf0] sm:$0xff]
    %v1461 = vld [vmem:[#allocation16 + $0xf8] sm:$0xff]
    %v1494 = vunpack.c.l.b16 %v1430
    %v1495 = vunpack.c.h.b16 %v1430
    %v1496 = vunpack.c.l.b16 %v1431
    %v1497 = vunpack.c.h.b16 %v1431
    %v1498 = vunpack.c.l.b16 %v1432
    %v1499 = vunpack.c.h.b16 %v1432
    %v1500 = vunpack.c.l.b16 %v1433
    %v1501 = vunpack.c.h.b16 %v1433
    %v1502 = vunpack.c.l.b16 %v1434
    %v1503 = vunpack.c.h.b16 %v1434
    %v1504 = vunpack.c.l.b16 %v1435
    %v1505 = vunpack.c.h.b16 %v1435
    %v1506 = vunpack.c.l.b16 %v1436
    %v1507 = vunpack.c.h.b16 %v1436
    %v1508 = vunpack.c.l.b16 %v1437
    %v1509 = vunpack.c.h.b16 %v1437
    %v1510 = vunpack.c.l.b16 %v1438
    %v1511 = vunpack.c.h.b16 %v1438
    %v1512 = vunpack.c.l.b16 %v1439
    %v1513 = vunpack.c.h.b16 %v1439
    %v1514 = vunpack.c.l.b16 %v1440
    %v1515 = vunpack.c.h.b16 %v1440
    %v1516 = vunpack.c.l.b16 %v1441
    %v1517 = vunpack.c.h.b16 %v1441
    %v1518 = vunpack.c.l.b16 %v1442
    %v1519 = vunpack.c.h.b16 %v1442
    %v1520 = vunpack.c.l.b16 %v1443
    %v1521 = vunpack.c.h.b16 %v1443
    %v1522 = vunpack.c.l.b16 %v1444
    %v1523 = vunpack.c.h.b16 %v1444
    %v1524 = vunpack.c.l.b16 %v1445
    %v1525 = vunpack.c.h.b16 %v1445
    %v1526 = vunpack.c.l.b16 %v1446
    %v1527 = vunpack.c.h.b16 %v1446
    %v1528 = vunpack.c.l.b16 %v1447
    %v1529 = vunpack.c.h.b16 %v1447
    %v1530 = vunpack.c.l.b16 %v1448
    %v1531 = vunpack.c.h.b16 %v1448
    %v1532 = vunpack.c.l.b16 %v1449
    %v1533 = vunpack.c.h.b16 %v1449
    %v1534 = vunpack.c.l.b16 %v1450
    %v1535 = vunpack.c.h.b16 %v1450
    %v1536 = vunpack.c.l.b16 %v1451
    %v1537 = vunpack.c.h.b16 %v1451
    %v1538 = vunpack.c.l.b16 %v1452
    %v1539 = vunpack.c.h.b16 %v1452
    %v1540 = vunpack.c.l.b16 %v1453
    %v1541 = vunpack.c.h.b16 %v1453
    %v1542 = vunpack.c.l.b16 %v1454
    %v1543 = vunpack.c.h.b16 %v1454
    %v1544 = vunpack.c.l.b16 %v1455
    %v1545 = vunpack.c.h.b16 %v1455
    %v1546 = vunpack.c.l.b16 %v1456
    %v1547 = vunpack.c.h.b16 %v1456
    %v1548 = vunpack.c.l.b16 %v1457
    %v1549 = vunpack.c.h.b16 %v1457
    %v1550 = vunpack.c.l.b16 %v1458
    %v1551 = vunpack.c.h.b16 %v1458
    %v1552 = vunpack.c.l.b16 %v1459
    %v1553 = vunpack.c.h.b16 %v1459
    %v1554 = vunpack.c.l.b16 %v1460
    %v1555 = vunpack.c.h.b16 %v1460
    %v1556 = vunpack.c.l.b16 %v1461
    %v1557 = vunpack.c.h.b16 %v1461
    %v1558 = vpack.c.b16 %v1496, %v1494
    %v1559 = vpack.c.b16 %v1497, %v1495
    %v1560 = vpack.c.b16 %v1500, %v1498
    %v1561 = vpack.c.b16 %v1501, %v1499
    %v1562 = vpack.c.b16 %v1504, %v1502
    %v1563 = vpack.c.b16 %v1505, %v1503
    %v1564 = vpack.c.b16 %v1508, %v1506
    %v1565 = vpack.c.b16 %v1509, %v1507
    %v1566 = vpack.c.b16 %v1512, %v1510
    %v1567 = vpack.c.b16 %v1513, %v1511
    %v1568 = vpack.c.b16 %v1516, %v1514
    %v1569 = vpack.c.b16 %v1517, %v1515
    %v1570 = vpack.c.b16 %v1520, %v1518
    %v1571 = vpack.c.b16 %v1521, %v1519
    %v1572 = vpack.c.b16 %v1524, %v1522
    %v1573 = vpack.c.b16 %v1525, %v1523
    %v1574 = vpack.c.b16 %v1528, %v1526
    %v1575 = vpack.c.b16 %v1529, %v1527
    %v1576 = vpack.c.b16 %v1532, %v1530
    %v1577 = vpack.c.b16 %v1533, %v1531
    %v1578 = vpack.c.b16 %v1536, %v1534
    %v1579 = vpack.c.b16 %v1537, %v1535
    %v1580 = vpack.c.b16 %v1540, %v1538
    %v1581 = vpack.c.b16 %v1541, %v1539
    %v1582 = vpack.c.b16 %v1544, %v1542
    %v1583 = vpack.c.b16 %v1545, %v1543
    %v1584 = vpack.c.b16 %v1548, %v1546
    %v1585 = vpack.c.b16 %v1549, %v1547
    %v1586 = vpack.c.b16 %v1552, %v1550
    %v1587 = vpack.c.b16 %v1553, %v1551
    %v1588 = vpack.c.b16 %v1556, %v1554
    %v1589 = vpack.c.b16 %v1557, %v1555
    %1622 = vmatprep.subr.bf16.mxu0 %v1573
    %1623 = vmatpush1.bf16.msra.mxu0 %v1572
    %1624 = vmatprep.subr.bf16.mxu0 %v1571
    %1625 = vmatpush1.bf16.msra.mxu0 %v1570
    %1626 = vmatprep.subr.bf16.mxu0 %v1569
    %1627 = vmatpush1.bf16.msra.mxu0 %v1568
    %1628 = vmatprep.subr.bf16.mxu0 %v1567
    %1629 = vmatpush1.bf16.msra.mxu0 %v1566
    %1630 = vmatprep.subr.bf16.mxu0 %v1565
    %1631 = vmatpush1.bf16.msra.mxu0 %v1564
    %1632 = vmatprep.subr.bf16.mxu0 %v1563
    %1633 = vmatpush1.bf16.msra.mxu0 %v1562
    %1634 = vmatprep.subr.bf16.mxu0 %v1561
    %1635 = vmatpush1.bf16.msra.mxu0 %v1560
    %1636 = vmatprep.subr.bf16.mxu0 %v1559
    %1637 = vmatpush1.bf16.msra.mxu0 %v1558
    %1638 = vmatprep.subr.bf16.mxu0 %v1589
    %1639 = vmatpush2.bf16.msra.mxu0 %v1588
    %1640 = vmatprep.subr.bf16.mxu0 %v1587
    %1641 = vmatpush2.bf16.msra.mxu0 %v1586
    %1642 = vmatprep.subr.bf16.mxu0 %v1585
    %1643 = vmatpush2.bf16.msra.mxu0 %v1584
    %1644 = vmatprep.subr.bf16.mxu0 %v1583
    %1645 = vmatpush2.bf16.msra.mxu0 %v1582
    %1646 = vmatprep.subr.bf16.mxu0 %v1581
    %1647 = vmatpush2.bf16.msra.mxu0 %v1580
    %1648 = vmatprep.subr.bf16.mxu0 %v1579
    %1649 = vmatpush2.bf16.msra.mxu0 %v1578
    %1650 = vmatprep.subr.bf16.mxu0 %v1577
    %1651 = vmatpush2.bf16.msra.mxu0 %v1576
    %1652 = vmatprep.subr.bf16.mxu0 %v1575
    %1653 = vmatpush2.bf16.msra.mxu0 %v1574
    %1654 = vmatprep.mubr.bf16.mxu0 %v1421
    %1655 = vmatmul.mubr.bf16.gmra.mxu0 %v1420
    %v1656 = vpop.f32.mrf.mxu0
    %v1657 = vadd.f32 0.0, %v1656
    %v1658 = vpop.f32.mrf.mxu0
    %v1659 = vadd.f32 0.0, %v1658
    %v1660 = vpop.f32.mrf.mxu0
    %v1661 = vadd.f32 0.0, %v1660
    %v1662 = vpop.f32.mrf.mxu0
    %v1663 = vadd.f32 0.0, %v1662
    %1664 = vdwg.mxu0
    %v1673 = vunpack.c.l.b16 %v1422
    %v1674 = vunpack.c.h.b16 %v1422
    %v1675 = vunpack.c.l.b16 %v1423
    %v1676 = vunpack.c.h.b16 %v1423
    %v1677 = vunpack.c.l.b16 %v1424
    %v1678 = vunpack.c.h.b16 %v1424
    %v1679 = vunpack.c.l.b16 %v1425
    %v1680 = vunpack.c.h.b16 %v1425
    %v1681 = vunpack.c.l.b16 %v1426
    %v1682 = vunpack.c.h.b16 %v1426
    %v1683 = vunpack.c.l.b16 %v1427
    %v1684 = vunpack.c.h.b16 %v1427
    %v1685 = vunpack.c.l.b16 %v1428
    %v1686 = vunpack.c.h.b16 %v1428
    %v1687 = vunpack.c.l.b16 %v1429
    %v1688 = vunpack.c.h.b16 %v1429
    %v1689 = vpack.c.b16 %v1675, %v1673
    %v1690 = vpack.c.b16 %v1676, %v1674
    %v1691 = vpack.c.b16 %v1679, %v1677
    %v1692 = vpack.c.b16 %v1680, %v1678
    %v1693 = vpack.c.b16 %v1683, %v1681
    %v1694 = vpack.c.b16 %v1684, %v1682
    %v1695 = vpack.c.b16 %v1687, %v1685
    %v1696 = vpack.c.b16 %v1688, %v1686
    %1705 = vmatprep.subr.bf16.mxu0 0
    %1706 = vmatpush1.bf16.msra.mxu0 0
    %1707 = vmatprep.subr.bf16.mxu0 0
    %1708 = vmatpush1.bf16.msra.mxu0 0
    %1709 = vmatprep.subr.bf16.mxu0 0
    %1710 = vmatpush1.bf16.msra.mxu0 0
    %1711 = vmatprep.subr.bf16.mxu0 0
    %1712 = vmatpush1.bf16.msra.mxu0 0
    %1713 = vmatprep.subr.bf16.mxu0 %v1696
    %1714 = vmatpush1.bf16.msra.mxu0 %v1695
    %1715 = vmatprep.subr.bf16.mxu0 %v1694
    %1716 = vmatpush1.bf16.msra.mxu0 %v1693
    %1717 = vmatprep.subr.bf16.mxu0 %v1692
    %1718 = vmatpush1.bf16.msra.mxu0 %v1691
    %1719 = vmatprep.subr.bf16.mxu0 %v1690
    %1720 = vmatpush1.bf16.msra.mxu0 %v1689
    %1721 = vmatprep.subr.bf16.mxu0 0
    %1722 = vmatpush2.bf16.msra.mxu0 0
    %1723 = vmatprep.subr.bf16.mxu0 0
    %1724 = vmatpush2.bf16.msra.mxu0 0
    %1725 = vmatprep.subr.bf16.mxu0 0
    %1726 = vmatpush2.bf16.msra.mxu0 0
    %1727 = vmatprep.subr.bf16.mxu0 0
    %1728 = vmatpush2.bf16.msra.mxu0 0
    %1729 = vmatprep.subr.bf16.mxu0 0
    %1730 = vmatpush2.bf16.msra.mxu0 0
    %1731 = vmatprep.subr.bf16.mxu0 0
    %1732 = vmatpush2.bf16.msra.mxu0 0
    %1733 = vmatprep.subr.bf16.mxu0 0
    %1734 = vmatpush2.bf16.msra.mxu0 0
    %1735 = vmatprep.subr.bf16.mxu0 0
    %1736 = vmatpush2.bf16.msra.mxu0 0
    %1737 = vmatprep.mubr.bf16.mxu0 0
    %1738 = vmatmul.mubr.bf16.gmra.mxu0 %v359
    %v1739 = vpop.f32.mrf.mxu0
    %v1740 = vadd.f32 %v1657, %v1739
    %v1741 = vpop.f32.mrf.mxu0
    %v1742 = vadd.f32 %v1659, %v1741
    %v1743 = vpop.f32.mrf.mxu0
    %v1744 = vadd.f32 %v1661, %v1743
    %v1745 = vpop.f32.mrf.mxu0
    %v1746 = vadd.f32 %v1663, %v1745
    %1747 = vdwg.mxu0
    %v1748 = vld [vmem:[#allocation17] sm:$0x3]
    %v1750 = vlaneseq
    %v1751 = vshrl.u32 %v1750, 7
    %v1752 = vsub.s32 0, %v1751
    %v1753 = vrot.slane %v1748, %v1752
    %v1754 = vlaneseq
    %v1755 = vshrl.u32 %v1754, 7
    %v1756 = vsub.s32 1, %v1755
    %v1757 = vrot.slane %v1748, %v1756
    %v1760 = vadd.f32 %v1740, %v1753
    %v1761 = vadd.f32 %v1742, %v1757
    %v1762 = vadd.f32 %v1744, %v1753
    %v1763 = vadd.f32 %v1746, %v1757
    %v1764 = vmax.f32 %v1760, 0.0
    %v1765 = vmax.f32 %v1761, 0.0
    %v1766 = vmax.f32 %v1762, 0.0
    %v1767 = vmax.f32 %v1763, 0.0
    %v1768 = vpack.c.bf16 %v1766, %v1764
    %v1769 = vpack.c.bf16 %v1767, %v1765
    %v1770 = vld [vmem:[#allocation19] sm:$0xff]
    %v1771 = vld [vmem:[#allocation19 + $0x8] sm:$0xff]
    %v1772 = vld [vmem:[#allocation19 + $0x10] sm:$0xff]
    %v1773 = vld [vmem:[#allocation19 + $0x18] sm:$0xff]
    %v1774 = vld [vmem:[#allocation19 + $0x20] sm:$0xff]
    %v1775 = vld [vmem:[#allocation19 + $0x28] sm:$0xff]
    %v1776 = vld [vmem:[#allocation19 + $0x30] sm:$0xff]
    %v1777 = vld [vmem:[#allocation19 + $0x38] sm:$0xff]
    %v1778 = vld [vmem:[#allocation19 + $0x40] sm:$0xff]
    %v1779 = vld [vmem:[#allocation19 + $0x48] sm:$0xff]
    %v1780 = vld [vmem:[#allocation19 + $0x50] sm:$0xff]
    %v1781 = vld [vmem:[#allocation19 + $0x58] sm:$0xff]
    %v1782 = vld [vmem:[#allocation19 + $0x60] sm:$0xff]
    %v1783 = vld [vmem:[#allocation19 + $0x68] sm:$0xff]
    %v1784 = vld [vmem:[#allocation19 + $0x70] sm:$0xff]
    %v1785 = vld [vmem:[#allocation19 + $0x78] sm:$0xff]
    %v1786 = vld [vmem:[#allocation19 + $0x80] sm:$0xff]
    %v1787 = vld [vmem:[#allocation19 + $0x88] sm:$0xff]
    %v1788 = vld [vmem:[#allocation19 + $0x90] sm:$0xff]
    %v1789 = vld [vmem:[#allocation19 + $0x98] sm:$0xff]
    %v1790 = vld [vmem:[#allocation19 + $0xa0] sm:$0xff]
    %v1791 = vld [vmem:[#allocation19 + $0xa8] sm:$0xff]
    %v1792 = vld [vmem:[#allocation19 + $0xb0] sm:$0xff]
    %v1793 = vld [vmem:[#allocation19 + $0xb8] sm:$0xff]
    %v1794 = vld [vmem:[#allocation19 + $0xc0] sm:$0xff]
    %v1795 = vld [vmem:[#allocation19 + $0xc8] sm:$0xff]
    %v1796 = vld [vmem:[#allocation19 + $0xd0] sm:$0xff]
    %v1797 = vld [vmem:[#allocation19 + $0xd8] sm:$0xff]
    %v1798 = vld [vmem:[#allocation19 + $0xe0] sm:$0xff]
    %v1799 = vld [vmem:[#allocation19 + $0xe8] sm:$0xff]
    %v1800 = vld [vmem:[#allocation19 + $0xf0] sm:$0xff]
    %v1801 = vld [vmem:[#allocation19 + $0xf8] sm:$0xff]
    %v1802 = vld [vmem:[#allocation20] sm:$0x3]
    %v1804 = vlaneseq
    %v1805 = vshrl.u32 %v1804, 7
    %v1806 = vsub.s32 0, %v1805
    %v1807 = vrot.slane %v1802, %v1806
    %v1808 = vlaneseq
    %v1809 = vshrl.u32 %v1808, 7
    %v1810 = vsub.s32 1, %v1809
    %v1811 = vrot.slane %v1802, %v1810
    %v1846 = vunpack.c.l.b16 %v1770
    %v1847 = vunpack.c.h.b16 %v1770
    %v1848 = vunpack.c.l.b16 %v1771
    %v1849 = vunpack.c.h.b16 %v1771
    %v1850 = vunpack.c.l.b16 %v1772
    %v1851 = vunpack.c.h.b16 %v1772
    %v1852 = vunpack.c.l.b16 %v1773
    %v1853 = vunpack.c.h.b16 %v1773
    %v1854 = vunpack.c.l.b16 %v1774
    %v1855 = vunpack.c.h.b16 %v1774
    %v1856 = vunpack.c.l.b16 %v1775
    %v1857 = vunpack.c.h.b16 %v1775
    %v1858 = vunpack.c.l.b16 %v1776
    %v1859 = vunpack.c.h.b16 %v1776
    %v1860 = vunpack.c.l.b16 %v1777
    %v1861 = vunpack.c.h.b16 %v1777
    %v1862 = vunpack.c.l.b16 %v1778
    %v1863 = vunpack.c.h.b16 %v1778
    %v1864 = vunpack.c.l.b16 %v1779
    %v1865 = vunpack.c.h.b16 %v1779
    %v1866 = vunpack.c.l.b16 %v1780
    %v1867 = vunpack.c.h.b16 %v1780
    %v1868 = vunpack.c.l.b16 %v1781
    %v1869 = vunpack.c.h.b16 %v1781
    %v1870 = vunpack.c.l.b16 %v1782
    %v1871 = vunpack.c.h.b16 %v1782
    %v1872 = vunpack.c.l.b16 %v1783
    %v1873 = vunpack.c.h.b16 %v1783
    %v1874 = vunpack.c.l.b16 %v1784
    %v1875 = vunpack.c.h.b16 %v1784
    %v1876 = vunpack.c.l.b16 %v1785
    %v1877 = vunpack.c.h.b16 %v1785
    %v1878 = vunpack.c.l.b16 %v1786
    %v1879 = vunpack.c.h.b16 %v1786
    %v1880 = vunpack.c.l.b16 %v1787
    %v1881 = vunpack.c.h.b16 %v1787
    %v1882 = vunpack.c.l.b16 %v1788
    %v1883 = vunpack.c.h.b16 %v1788
    %v1884 = vunpack.c.l.b16 %v1789
    %v1885 = vunpack.c.h.b16 %v1789
    %v1886 = vunpack.c.l.b16 %v1790
    %v1887 = vunpack.c.h.b16 %v1790
    %v1888 = vunpack.c.l.b16 %v1791
    %v1889 = vunpack.c.h.b16 %v1791
    %v1890 = vunpack.c.l.b16 %v1792
    %v1891 = vunpack.c.h.b16 %v1792
    %v1892 = vunpack.c.l.b16 %v1793
    %v1893 = vunpack.c.h.b16 %v1793
    %v1894 = vunpack.c.l.b16 %v1794
    %v1895 = vunpack.c.h.b16 %v1794
    %v1896 = vunpack.c.l.b16 %v1795
    %v1897 = vunpack.c.h.b16 %v1795
    %v1898 = vunpack.c.l.b16 %v1796
    %v1899 = vunpack.c.h.b16 %v1796
    %v1900 = vunpack.c.l.b16 %v1797
    %v1901 = vunpack.c.h.b16 %v1797
    %v1902 = vunpack.c.l.b16 %v1798
    %v1903 = vunpack.c.h.b16 %v1798
    %v1904 = vunpack.c.l.b16 %v1799
    %v1905 = vunpack.c.h.b16 %v1799
    %v1906 = vunpack.c.l.b16 %v1800
    %v1907 = vunpack.c.h.b16 %v1800
    %v1908 = vunpack.c.l.b16 %v1801
    %v1909 = vunpack.c.h.b16 %v1801
    %v1910 = vpack.c.b16 %v1848, %v1846
    %v1911 = vpack.c.b16 %v1849, %v1847
    %v1912 = vpack.c.b16 %v1852, %v1850
    %v1913 = vpack.c.b16 %v1853, %v1851
    %v1914 = vpack.c.b16 %v1856, %v1854
    %v1915 = vpack.c.b16 %v1857, %v1855
    %v1916 = vpack.c.b16 %v1860, %v1858
    %v1917 = vpack.c.b16 %v1861, %v1859
    %v1918 = vpack.c.b16 %v1864, %v1862
    %v1919 = vpack.c.b16 %v1865, %v1863
    %v1920 = vpack.c.b16 %v1868, %v1866
    %v1921 = vpack.c.b16 %v1869, %v1867
    %v1922 = vpack.c.b16 %v1872, %v1870
    %v1923 = vpack.c.b16 %v1873, %v1871
    %v1924 = vpack.c.b16 %v1876, %v1874
    %v1925 = vpack.c.b16 %v1877, %v1875
    %v1926 = vpack.c.b16 %v1880, %v1878
    %v1927 = vpack.c.b16 %v1881, %v1879
    %v1928 = vpack.c.b16 %v1884, %v1882
    %v1929 = vpack.c.b16 %v1885, %v1883
    %v1930 = vpack.c.b16 %v1888, %v1886
    %v1931 = vpack.c.b16 %v1889, %v1887
    %v1932 = vpack.c.b16 %v1892, %v1890
    %v1933 = vpack.c.b16 %v1893, %v1891
    %v1934 = vpack.c.b16 %v1896, %v1894
    %v1935 = vpack.c.b16 %v1897, %v1895
    %v1936 = vpack.c.b16 %v1900, %v1898
    %v1937 = vpack.c.b16 %v1901, %v1899
    %v1938 = vpack.c.b16 %v1904, %v1902
    %v1939 = vpack.c.b16 %v1905, %v1903
    %v1940 = vpack.c.b16 %v1908, %v1906
    %v1941 = vpack.c.b16 %v1909, %v1907
    %1974 = vmatprep.subr.bf16.mxu0 %v1925
    %1975 = vmatpush1.bf16.msra.mxu0 %v1924
    %1976 = vmatprep.subr.bf16.mxu0 %v1923
    %1977 = vmatpush1.bf16.msra.mxu0 %v1922
    %1978 = vmatprep.subr.bf16.mxu0 %v1921
    %1979 = vmatpush1.bf16.msra.mxu0 %v1920
    %1980 = vmatprep.subr.bf16.mxu0 %v1919
    %1981 = vmatpush1.bf16.msra.mxu0 %v1918
    %1982 = vmatprep.subr.bf16.mxu0 %v1917
    %1983 = vmatpush1.bf16.msra.mxu0 %v1916
    %1984 = vmatprep.subr.bf16.mxu0 %v1915
    %1985 = vmatpush1.bf16.msra.mxu0 %v1914
    %1986 = vmatprep.subr.bf16.mxu0 %v1913
    %1987 = vmatpush1.bf16.msra.mxu0 %v1912
    %1988 = vmatprep.subr.bf16.mxu0 %v1911
    %1989 = vmatpush1.bf16.msra.mxu0 %v1910
    %1990 = vmatprep.subr.bf16.mxu0 %v1941
    %1991 = vmatpush2.bf16.msra.mxu0 %v1940
    %1992 = vmatprep.subr.bf16.mxu0 %v1939
    %1993 = vmatpush2.bf16.msra.mxu0 %v1938
    %1994 = vmatprep.subr.bf16.mxu0 %v1937
    %1995 = vmatpush2.bf16.msra.mxu0 %v1936
    %1996 = vmatprep.subr.bf16.mxu0 %v1935
    %1997 = vmatpush2.bf16.msra.mxu0 %v1934
    %1998 = vmatprep.subr.bf16.mxu0 %v1933
    %1999 = vmatpush2.bf16.msra.mxu0 %v1932
    %2000 = vmatprep.subr.bf16.mxu0 %v1931
    %2001 = vmatpush2.bf16.msra.mxu0 %v1930
    %2002 = vmatprep.subr.bf16.mxu0 %v1929
    %2003 = vmatpush2.bf16.msra.mxu0 %v1928
    %2004 = vmatprep.subr.bf16.mxu0 %v1927
    %2005 = vmatpush2.bf16.msra.mxu0 %v1926
    %2006 = vmatprep.mubr.bf16.mxu0 %v1769
    %2007 = vmatmul.mubr.bf16.gmra.mxu0 %v1768
    %v2008 = vpop.f32.mrf.mxu0
    %v2009 = vadd.f32 %v1807, %v2008
    %v2010 = vpop.f32.mrf.mxu0
    %v2011 = vadd.f32 %v1811, %v2010
    %v2012 = vpop.f32.mrf.mxu0
    %v2013 = vadd.f32 %v1807, %v2012
    %v2014 = vpop.f32.mrf.mxu0
    %v2015 = vadd.f32 %v1811, %v2014
    %2016 = vdwg.mxu0
    %v2017 = vmax.f32 %v2009, 0.0
    %v2018 = vmax.f32 %v2011, 0.0
    %v2019 = vmax.f32 %v2013, 0.0
    %v2020 = vmax.f32 %v2015, 0.0
    %v2021 = vpack.c.bf16 %v2019, %v2017
    %v2022 = vpack.c.bf16 %v2020, %v2018
    %v2023 = vld [vmem:[#allocation22] sm:$0xff]
    %v2024 = vld [vmem:[#allocation22 + $0x8] sm:$0xff]
    %v2025 = vld [vmem:[#allocation22 + $0x10] sm:$0xff]
    %v2026 = vld [vmem:[#allocation22 + $0x18] sm:$0xff]
    %v2027 = vld [vmem:[#allocation22 + $0x20] sm:$0xff]
    %v2028 = vld [vmem:[#allocation22 + $0x28] sm:$0xff]
    %v2029 = vld [vmem:[#allocation22 + $0x30] sm:$0xff]
    %v2030 = vld [vmem:[#allocation22 + $0x38] sm:$0xff]
    %v2031 = vld [vmem:[#allocation22 + $0x40] sm:$0xff]
    %v2032 = vld [vmem:[#allocation22 + $0x48] sm:$0xff]
    %v2033 = vld [vmem:[#allocation22 + $0x50] sm:$0xff]
    %v2034 = vld [vmem:[#allocation22 + $0x58] sm:$0xff]
    %v2035 = vld [vmem:[#allocation22 + $0x60] sm:$0xff]
    %v2036 = vld [vmem:[#allocation22 + $0x68] sm:$0xff]
    %v2037 = vld [vmem:[#allocation22 + $0x70] sm:$0xff]
    %v2038 = vld [vmem:[#allocation22 + $0x78] sm:$0xff]
    %v2039 = vld [vmem:[#allocation22 + $0x80] sm:$0xff]
    %v2040 = vld [vmem:[#allocation22 + $0x88] sm:$0xff]
    %v2041 = vld [vmem:[#allocation22 + $0x90] sm:$0xff]
    %v2042 = vld [vmem:[#allocation22 + $0x98] sm:$0xff]
    %v2043 = vld [vmem:[#allocation22 + $0xa0] sm:$0xff]
    %v2044 = vld [vmem:[#allocation22 + $0xa8] sm:$0xff]
    %v2045 = vld [vmem:[#allocation22 + $0xb0] sm:$0xff]
    %v2046 = vld [vmem:[#allocation22 + $0xb8] sm:$0xff]
    %v2047 = vld [vmem:[#allocation22 + $0xc0] sm:$0xff]
    %v2048 = vld [vmem:[#allocation22 + $0xc8] sm:$0xff]
    %v2049 = vld [vmem:[#allocation22 + $0xd0] sm:$0xff]
    %v2050 = vld [vmem:[#allocation22 + $0xd8] sm:$0xff]
    %v2051 = vld [vmem:[#allocation22 + $0xe0] sm:$0xff]
    %v2052 = vld [vmem:[#allocation22 + $0xe8] sm:$0xff]
    %v2053 = vld [vmem:[#allocation22 + $0xf0] sm:$0xff]
    %v2054 = vld [vmem:[#allocation22 + $0xf8] sm:$0xff]
    %v2055 = vld [vmem:[%s18] sm:$0x3]
    %v2057 = vlaneseq
    %v2058 = vshrl.u32 %v2057, 7
    %v2059 = vsub.s32 0, %v2058
    %v2060 = vrot.slane %v2055, %v2059
    %v2061 = vlaneseq
    %v2062 = vshrl.u32 %v2061, 7
    %v2063 = vsub.s32 1, %v2062
    %v2064 = vrot.slane %v2055, %v2063
    %v2099 = vunpack.c.l.b16 %v2023
    %v2100 = vunpack.c.h.b16 %v2023
    %v2101 = vunpack.c.l.b16 %v2024
    %v2102 = vunpack.c.h.b16 %v2024
    %v2103 = vunpack.c.l.b16 %v2025
    %v2104 = vunpack.c.h.b16 %v2025
    %v2105 = vunpack.c.l.b16 %v2026
    %v2106 = vunpack.c.h.b16 %v2026
    %v2107 = vunpack.c.l.b16 %v2027
    %v2108 = vunpack.c.h.b16 %v2027
    %v2109 = vunpack.c.l.b16 %v2028
    %v2110 = vunpack.c.h.b16 %v2028
    %v2111 = vunpack.c.l.b16 %v2029
    %v2112 = vunpack.c.h.b16 %v2029
    %v2113 = vunpack.c.l.b16 %v2030
    %v2114 = vunpack.c.h.b16 %v2030
    %v2115 = vunpack.c.l.b16 %v2031
    %v2116 = vunpack.c.h.b16 %v2031
    %v2117 = vunpack.c.l.b16 %v2032
    %v2118 = vunpack.c.h.b16 %v2032
    %v2119 = vunpack.c.l.b16 %v2033
    %v2120 = vunpack.c.h.b16 %v2033
    %v2121 = vunpack.c.l.b16 %v2034
    %v2122 = vunpack.c.h.b16 %v2034
    %v2123 = vunpack.c.l.b16 %v2035
    %v2124 = vunpack.c.h.b16 %v2035
    %v2125 = vunpack.c.l.b16 %v2036
    %v2126 = vunpack.c.h.b16 %v2036
    %v2127 = vunpack.c.l.b16 %v2037
    %v2128 = vunpack.c.h.b16 %v2037
    %v2129 = vunpack.c.l.b16 %v2038
    %v2130 = vunpack.c.h.b16 %v2038
    %v2131 = vunpack.c.l.b16 %v2039
    %v2132 = vunpack.c.h.b16 %v2039
    %v2133 = vunpack.c.l.b16 %v2040
    %v2134 = vunpack.c.h.b16 %v2040
    %v2135 = vunpack.c.l.b16 %v2041
    %v2136 = vunpack.c.h.b16 %v2041
    %v2137 = vunpack.c.l.b16 %v2042
    %v2138 = vunpack.c.h.b16 %v2042
    %v2139 = vunpack.c.l.b16 %v2043
    %v2140 = vunpack.c.h.b16 %v2043
    %v2141 = vunpack.c.l.b16 %v2044
    %v2142 = vunpack.c.h.b16 %v2044
    %v2143 = vunpack.c.l.b16 %v2045
    %v2144 = vunpack.c.h.b16 %v2045
    %v2145 = vunpack.c.l.b16 %v2046
    %v2146 = vunpack.c.h.b16 %v2046
    %v2147 = vunpack.c.l.b16 %v2047
    %v2148 = vunpack.c.h.b16 %v2047
    %v2149 = vunpack.c.l.b16 %v2048
    %v2150 = vunpack.c.h.b16 %v2048
    %v2151 = vunpack.c.l.b16 %v2049
    %v2152 = vunpack.c.h.b16 %v2049
    %v2153 = vunpack.c.l.b16 %v2050
    %v2154 = vunpack.c.h.b16 %v2050
    %v2155 = vunpack.c.l.b16 %v2051
    %v2156 = vunpack.c.h.b16 %v2051
    %v2157 = vunpack.c.l.b16 %v2052
    %v2158 = vunpack.c.h.b16 %v2052
    %v2159 = vunpack.c.l.b16 %v2053
    %v2160 = vunpack.c.h.b16 %v2053
    %v2161 = vunpack.c.l.b16 %v2054
    %v2162 = vunpack.c.h.b16 %v2054
    %v2163 = vpack.c.b16 %v2101, %v2099
    %v2164 = vpack.c.b16 %v2102, %v2100
    %v2165 = vpack.c.b16 %v2105, %v2103
    %v2166 = vpack.c.b16 %v2106, %v2104
    %v2167 = vpack.c.b16 %v2109, %v2107
    %v2168 = vpack.c.b16 %v2110, %v2108
    %v2169 = vpack.c.b16 %v2113, %v2111
    %v2170 = vpack.c.b16 %v2114, %v2112
    %v2171 = vpack.c.b16 %v2117, %v2115
    %v2172 = vpack.c.b16 %v2118, %v2116
    %v2173 = vpack.c.b16 %v2121, %v2119
    %v2174 = vpack.c.b16 %v2122, %v2120
    %v2175 = vpack.c.b16 %v2125, %v2123
    %v2176 = vpack.c.b16 %v2126, %v2124
    %v2177 = vpack.c.b16 %v2129, %v2127
    %v2178 = vpack.c.b16 %v2130, %v2128
    %v2179 = vpack.c.b16 %v2133, %v2131
    %v2180 = vpack.c.b16 %v2134, %v2132
    %v2181 = vpack.c.b16 %v2137, %v2135
    %v2182 = vpack.c.b16 %v2138, %v2136
    %v2183 = vpack.c.b16 %v2141, %v2139
    %v2184 = vpack.c.b16 %v2142, %v2140
    %v2185 = vpack.c.b16 %v2145, %v2143
    %v2186 = vpack.c.b16 %v2146, %v2144
    %v2187 = vpack.c.b16 %v2149, %v2147
    %v2188 = vpack.c.b16 %v2150, %v2148
    %v2189 = vpack.c.b16 %v2153, %v2151
    %v2190 = vpack.c.b16 %v2154, %v2152
    %v2191 = vpack.c.b16 %v2157, %v2155
    %v2192 = vpack.c.b16 %v2158, %v2156
    %v2193 = vpack.c.b16 %v2161, %v2159
    %v2194 = vpack.c.b16 %v2162, %v2160
    %2227 = vmatprep.subr.bf16.mxu0 %v2178
    %2228 = vmatpush1.bf16.msra.mxu0 %v2177
    %2229 = vmatprep.subr.bf16.mxu0 %v2176
    %2230 = vmatpush1.bf16.msra.mxu0 %v2175
    %2231 = vmatprep.subr.bf16.mxu0 %v2174
    %2232 = vmatpush1.bf16.msra.mxu0 %v2173
    %2233 = vmatprep.subr.bf16.mxu0 %v2172
    %2234 = vmatpush1.bf16.msra.mxu0 %v2171
    %2235 = vmatprep.subr.bf16.mxu0 %v2170
    %2236 = vmatpush1.bf16.msra.mxu0 %v2169
    %2237 = vmatprep.subr.bf16.mxu0 %v2168
    %2238 = vmatpush1.bf16.msra.mxu0 %v2167
    %2239 = vmatprep.subr.bf16.mxu0 %v2166
    %2240 = vmatpush1.bf16.msra.mxu0 %v2165
    %2241 = vmatprep.subr.bf16.mxu0 %v2164
    %2242 = vmatpush1.bf16.msra.mxu0 %v2163
    %2243 = vmatprep.subr.bf16.mxu0 %v2194
    %2244 = vmatpush2.bf16.msra.mxu0 %v2193
    %2245 = vmatprep.subr.bf16.mxu0 %v2192
    %2246 = vmatpush2.bf16.msra.mxu0 %v2191
    %2247 = vmatprep.subr.bf16.mxu0 %v2190
    %2248 = vmatpush2.bf16.msra.mxu0 %v2189
    %2249 = vmatprep.subr.bf16.mxu0 %v2188
    %2250 = vmatpush2.bf16.msra.mxu0 %v2187
    %2251 = vmatprep.subr.bf16.mxu0 %v2186
    %2252 = vmatpush2.bf16.msra.mxu0 %v2185
    %2253 = vmatprep.subr.bf16.mxu0 %v2184
    %2254 = vmatpush2.bf16.msra.mxu0 %v2183
    %2255 = vmatprep.subr.bf16.mxu0 %v2182
    %2256 = vmatpush2.bf16.msra.mxu0 %v2181
    %2257 = vmatprep.subr.bf16.mxu0 %v2180
    %2258 = vmatpush2.bf16.msra.mxu0 %v2179
    %2259 = vmatprep.mubr.bf16.mxu0 %v2022
    %2260 = vmatmul.mubr.bf16.gmra.mxu0 %v2021
    %v2261 = vpop.f32.mrf.mxu0
    %v2262 = vadd.f32 %v2060, %v2261
    %v2263 = vpop.f32.mrf.mxu0
    %v2264 = vadd.f32 %v2064, %v2263
    %v2265 = vpop.f32.mrf.mxu0
    %v2266 = vadd.f32 %v2060, %v2265
    %v2267 = vpop.f32.mrf.mxu0
    %v2268 = vadd.f32 %v2064, %v2267
    %2269 = vdwg.mxu0
    %v2270 = vmax.f32 %v2262, 0.0
    %v2271 = vmax.f32 %v2264, 0.0
    %v2272 = vmax.f32 %v2266, 0.0
    %v2273 = vmax.f32 %v2268, 0.0
    %v2274 = vpack.c.bf16 %v2272, %v2270
    %v2275 = vpack.c.bf16 %v2273, %v2271
    %v2276 = vunpack.c.l.bf16 %v2274
    %v2277 = vunpack.c.l.bf16 %v2275
    %v2278 = vunpack.c.h.bf16 %v2274
    %v2279 = vunpack.c.h.bf16 %v2275
    %v2280 = vld [vmem:[%s19] sm:$0x3]
    %v2282 = vlaneseq
    %v2283 = vshrl.u32 %v2282, 7
    %v2284 = vsub.s32 0, %v2283
    %v2285 = vrot.slane %v2280, %v2284
    %v2286 = vlaneseq
    %v2287 = vshrl.u32 %v2286, 7
    %v2288 = vsub.s32 1, %v2287
    %v2289 = vrot.slane %v2280, %v2288
    %v2292 = vmul.f32 %v2276, %v2285
    %v2293 = vmul.f32 %v2277, %v2289
    %v2294 = vmul.f32 %v2278, %v2285
    %v2295 = vmul.f32 %v2279, %v2289
    %v2296 = vadd.f32 %v2292, %v2293
    %2297 = vadd.xlane.f32.xlu0 %v2296
    %v2298 = vpop.xlane.xlu0 %2297
    %v2299 = vadd.f32 %v2294, %v2295
    %2300 = vadd.xlane.f32.xlu0 %v2299
    %v2301 = vpop.xlane.xlu0 %2300
    %v2302 = vld [vmem:[#allocation2] sm:$0x1]
    %v2304 = vlaneseq
    %v2305 = vshrl.u32 %v2304, 7
    %v2306 = vsub.s32 0, %v2305
    %v2307 = vrot.slane %v2302, %v2306
    %v2309 = vadd.f32 %v2298, %v2307
    %v2310 = vadd.f32 %v2301, %v2307
    %v2311 = vld [vmem:[#allocation23] sm:$0xff]
    %v2312 = vld [vmem:[#allocation23 + $0x8] sm:$0xff]
    %v2313 = vld [vmem:[#allocation23 + $0x10] sm:$0xff]
    %v2314 = vld [vmem:[#allocation23 + $0x18] sm:$0xff]
    %v2315 = vld [vmem:[#allocation23 + $0x20] sm:$0xff]
    %v2316 = vld [vmem:[#allocation23 + $0x28] sm:$0xff]
    %v2317 = vld [vmem:[#allocation23 + $0x30] sm:$0xff]
    %v2318 = vld [vmem:[#allocation23 + $0x38] sm:$0xff]
    %v2319 = vld [vmem:[#allocation23 + $0x40] sm:$0xff]
    %v2320 = vld [vmem:[#allocation23 + $0x48] sm:$0xff]
    %v2321 = vld [vmem:[#allocation23 + $0x50] sm:$0xff]
    %v2322 = vld [vmem:[#allocation23 + $0x58] sm:$0xff]
    %v2323 = vld [vmem:[#allocation23 + $0x60] sm:$0xff]
    %v2324 = vld [vmem:[#allocation23 + $0x68] sm:$0xff]
    %v2325 = vld [vmem:[#allocation23 + $0x70] sm:$0xff]
    %v2326 = vld [vmem:[#allocation23 + $0x78] sm:$0xff]
    %v2327 = vld [vmem:[#allocation23 + $0x80] sm:$0xff]
    %v2328 = vld [vmem:[#allocation23 + $0x88] sm:$0xff]
    %v2329 = vld [vmem:[#allocation23 + $0x90] sm:$0xff]
    %v2330 = vld [vmem:[#allocation23 + $0x98] sm:$0xff]
    %v2331 = vld [vmem:[#allocation23 + $0xa0] sm:$0xff]
    %v2332 = vld [vmem:[#allocation23 + $0xa8] sm:$0xff]
    %v2333 = vld [vmem:[#allocation23 + $0xb0] sm:$0xff]
    %v2334 = vld [vmem:[#allocation23 + $0xb8] sm:$0xff]
    %v2335 = vld [vmem:[#allocation23 + $0xc0] sm:$0xff]
    %v2336 = vld [vmem:[#allocation23 + $0xc8] sm:$0xff]
    %v2337 = vld [vmem:[#allocation23 + $0xd0] sm:$0xff]
    %v2338 = vld [vmem:[#allocation23 + $0xd8] sm:$0xff]
    %v2339 = vld [vmem:[#allocation23 + $0xe0] sm:$0xff]
    %v2340 = vld [vmem:[#allocation23 + $0xe8] sm:$0xff]
    %v2341 = vld [vmem:[#allocation23 + $0xf0] sm:$0xff]
    %v2342 = vld [vmem:[#allocation23 + $0xf8] sm:$0xff]
    %v2343 = vld [vmem:[%s22] sm:$0x3]
    %v2345 = vlaneseq
    %v2346 = vshrl.u32 %v2345, 7
    %v2347 = vsub.s32 0, %v2346
    %v2348 = vrot.slane %v2343, %v2347
    %v2349 = vlaneseq
    %v2350 = vshrl.u32 %v2349, 7
    %v2351 = vsub.s32 1, %v2350
    %v2352 = vrot.slane %v2343, %v2351
    %v2387 = vunpack.c.l.b16 %v2311
    %v2388 = vunpack.c.h.b16 %v2311
    %v2389 = vunpack.c.l.b16 %v2312
    %v2390 = vunpack.c.h.b16 %v2312
    %v2391 = vunpack.c.l.b16 %v2313
    %v2392 = vunpack.c.h.b16 %v2313
    %v2393 = vunpack.c.l.b16 %v2314
    %v2394 = vunpack.c.h.b16 %v2314
    %v2395 = vunpack.c.l.b16 %v2315
    %v2396 = vunpack.c.h.b16 %v2315
    %v2397 = vunpack.c.l.b16 %v2316
    %v2398 = vunpack.c.h.b16 %v2316
    %v2399 = vunpack.c.l.b16 %v2317
    %v2400 = vunpack.c.h.b16 %v2317
    %v2401 = vunpack.c.l.b16 %v2318
    %v2402 = vunpack.c.h.b16 %v2318
    %v2403 = vunpack.c.l.b16 %v2319
    %v2404 = vunpack.c.h.b16 %v2319
    %v2405 = vunpack.c.l.b16 %v2320
    %v2406 = vunpack.c.h.b16 %v2320
    %v2407 = vunpack.c.l.b16 %v2321
    %v2408 = vunpack.c.h.b16 %v2321
    %v2409 = vunpack.c.l.b16 %v2322
    %v2410 = vunpack.c.h.b16 %v2322
    %v2411 = vunpack.c.l.b16 %v2323
    %v2412 = vunpack.c.h.b16 %v2323
    %v2413 = vunpack.c.l.b16 %v2324
    %v2414 = vunpack.c.h.b16 %v2324
    %v2415 = vunpack.c.l.b16 %v2325
    %v2416 = vunpack.c.h.b16 %v2325
    %v2417 = vunpack.c.l.b16 %v2326
    %v2418 = vunpack.c.h.b16 %v2326
    %v2419 = vunpack.c.l.b16 %v2327
    %v2420 = vunpack.c.h.b16 %v2327
    %v2421 = vunpack.c.l.b16 %v2328
    %v2422 = vunpack.c.h.b16 %v2328
    %v2423 = vunpack.c.l.b16 %v2329
    %v2424 = vunpack.c.h.b16 %v2329
    %v2425 = vunpack.c.l.b16 %v2330
    %v2426 = vunpack.c.h.b16 %v2330
    %v2427 = vunpack.c.l.b16 %v2331
    %v2428 = vunpack.c.h.b16 %v2331
    %v2429 = vunpack.c.l.b16 %v2332
    %v2430 = vunpack.c.h.b16 %v2332
    %v2431 = vunpack.c.l.b16 %v2333
    %v2432 = vunpack.c.h.b16 %v2333
    %v2433 = vunpack.c.l.b16 %v2334
    %v2434 = vunpack.c.h.b16 %v2334
    %v2435 = vunpack.c.l.b16 %v2335
    %v2436 = vunpack.c.h.b16 %v2335
    %v2437 = vunpack.c.l.b16 %v2336
    %v2438 = vunpack.c.h.b16 %v2336
    %v2439 = vunpack.c.l.b16 %v2337
    %v2440 = vunpack.c.h.b16 %v2337
    %v2441 = vunpack.c.l.b16 %v2338
    %v2442 = vunpack.c.h.b16 %v2338
    %v2443 = vunpack.c.l.b16 %v2339
    %v2444 = vunpack.c.h.b16 %v2339
    %v2445 = vunpack.c.l.b16 %v2340
    %v2446 = vunpack.c.h.b16 %v2340
    %v2447 = vunpack.c.l.b16 %v2341
    %v2448 = vunpack.c.h.b16 %v2341
    %v2449 = vunpack.c.l.b16 %v2342
    %v2450 = vunpack.c.h.b16 %v2342
    %v2451 = vpack.c.b16 %v2389, %v2387
    %v2452 = vpack.c.b16 %v2390, %v2388
    %v2453 = vpack.c.b16 %v2393, %v2391
    %v2454 = vpack.c.b16 %v2394, %v2392
    %v2455 = vpack.c.b16 %v2397, %v2395
    %v2456 = vpack.c.b16 %v2398, %v2396
    %v2457 = vpack.c.b16 %v2401, %v2399
    %v2458 = vpack.c.b16 %v2402, %v2400
    %v2459 = vpack.c.b16 %v2405, %v2403
    %v2460 = vpack.c.b16 %v2406, %v2404
    %v2461 = vpack.c.b16 %v2409, %v2407
    %v2462 = vpack.c.b16 %v2410, %v2408
    %v2463 = vpack.c.b16 %v2413, %v2411
    %v2464 = vpack.c.b16 %v2414, %v2412
    %v2465 = vpack.c.b16 %v2417, %v2415
    %v2466 = vpack.c.b16 %v2418, %v2416
    %v2467 = vpack.c.b16 %v2421, %v2419
    %v2468 = vpack.c.b16 %v2422, %v2420
    %v2469 = vpack.c.b16 %v2425, %v2423
    %v2470 = vpack.c.b16 %v2426, %v2424
    %v2471 = vpack.c.b16 %v2429, %v2427
    %v2472 = vpack.c.b16 %v2430, %v2428
    %v2473 = vpack.c.b16 %v2433, %v2431
    %v2474 = vpack.c.b16 %v2434, %v2432
    %v2475 = vpack.c.b16 %v2437, %v2435
    %v2476 = vpack.c.b16 %v2438, %v2436
    %v2477 = vpack.c.b16 %v2441, %v2439
    %v2478 = vpack.c.b16 %v2442, %v2440
    %v2479 = vpack.c.b16 %v2445, %v2443
    %v2480 = vpack.c.b16 %v2446, %v2444
    %v2481 = vpack.c.b16 %v2449, %v2447
    %v2482 = vpack.c.b16 %v2450, %v2448
    %2515 = vmatprep.subr.bf16.mxu0 %v2466
    %2516 = vmatpush1.bf16.msra.mxu0 %v2465
    %2517 = vmatprep.subr.bf16.mxu0 %v2464
    %2518 = vmatpush1.bf16.msra.mxu0 %v2463
    %2519 = vmatprep.subr.bf16.mxu0 %v2462
    %2520 = vmatpush1.bf16.msra.mxu0 %v2461
    %2521 = vmatprep.subr.bf16.mxu0 %v2460
    %2522 = vmatpush1.bf16.msra.mxu0 %v2459
    %2523 = vmatprep.subr.bf16.mxu0 %v2458
    %2524 = vmatpush1.bf16.msra.mxu0 %v2457
    %2525 = vmatprep.subr.bf16.mxu0 %v2456
    %2526 = vmatpush1.bf16.msra.mxu0 %v2455
    %2527 = vmatprep.subr.bf16.mxu0 %v2454
    %2528 = vmatpush1.bf16.msra.mxu0 %v2453
    %2529 = vmatprep.subr.bf16.mxu0 %v2452
    %2530 = vmatpush1.bf16.msra.mxu0 %v2451
    %2531 = vmatprep.subr.bf16.mxu0 %v2482
    %2532 = vmatpush2.bf16.msra.mxu0 %v2481
    %2533 = vmatprep.subr.bf16.mxu0 %v2480
    %2534 = vmatpush2.bf16.msra.mxu0 %v2479
    %2535 = vmatprep.subr.bf16.mxu0 %v2478
    %2536 = vmatpush2.bf16.msra.mxu0 %v2477
    %2537 = vmatprep.subr.bf16.mxu0 %v2476
    %2538 = vmatpush2.bf16.msra.mxu0 %v2475
    %2539 = vmatprep.subr.bf16.mxu0 %v2474
    %2540 = vmatpush2.bf16.msra.mxu0 %v2473
    %2541 = vmatprep.subr.bf16.mxu0 %v2472
    %2542 = vmatpush2.bf16.msra.mxu0 %v2471
    %2543 = vmatprep.subr.bf16.mxu0 %v2470
    %2544 = vmatpush2.bf16.msra.mxu0 %v2469
    %2545 = vmatprep.subr.bf16.mxu0 %v2468
    %2546 = vmatpush2.bf16.msra.mxu0 %v2467
    %2547 = vmatprep.mubr.bf16.mxu0 %v2275
    %2548 = vmatmul.mubr.bf16.gmra.mxu0 %v2274
    %v2549 = vpop.f32.mrf.mxu0
    %v2550 = vadd.f32 %v2348, %v2549
    %v2551 = vpop.f32.mrf.mxu0
    %v2552 = vadd.f32 %v2352, %v2551
    %v2553 = vpop.f32.mrf.mxu0
    %v2554 = vadd.f32 %v2348, %v2553
    %v2555 = vpop.f32.mrf.mxu0
    %v2556 = vadd.f32 %v2352, %v2555
    %2557 = vdwg.mxu0
    %v2558 = vpack.c.bf16 %v2554, %v2550
    %v2559 = vpack.c.bf16 %v2556, %v2552
    %v2560 = vld [vmem:[#allocation25] sm:$0xf]
    %v2561 = vld [vmem:[#allocation25 + $0x4] sm:$0xf]
    %v2562 = vld [vmem:[#allocation25 + $0x8] sm:$0xf]
    %v2563 = vld [vmem:[#allocation25 + $0xc] sm:$0xf]
    %v2564 = vld [vmem:[#allocation25 + $0x10] sm:$0xf]
    %v2565 = vld [vmem:[#allocation25 + $0x14] sm:$0xf]
    %v2566 = vld [vmem:[#allocation25 + $0x18] sm:$0xf]
    %v2567 = vld [vmem:[#allocation25 + $0x1c] sm:$0xf]
    %v2568 = vld [vmem:[#allocation25 + $0x20] sm:$0xf]
    %v2569 = vld [vmem:[#allocation25 + $0x24] sm:$0xf]
    %v2570 = vld [vmem:[#allocation25 + $0x28] sm:$0xf]
    %v2571 = vld [vmem:[#allocation25 + $0x2c] sm:$0xf]
    %v2572 = vld [vmem:[#allocation25 + $0x30] sm:$0xf]
    %v2573 = vld [vmem:[#allocation25 + $0x34] sm:$0xf]
    %v2574 = vld [vmem:[#allocation25 + $0x38] sm:$0xf]
    %v2575 = vld [vmem:[#allocation25 + $0x3c] sm:$0xf]
    %v2576 = vld [vmem:[#allocation25 + $0x40] sm:$0xf]
    %v2577 = vld [vmem:[#allocation25 + $0x44] sm:$0xf]
    %v2578 = vld [vmem:[#allocation25 + $0x48] sm:$0xf]
    %v2579 = vld [vmem:[#allocation25 + $0x4c] sm:$0xf]
    %v2580 = vld [vmem:[#allocation25 + $0x50] sm:$0xf]
    %v2581 = vld [vmem:[#allocation25 + $0x54] sm:$0xf]
    %v2582 = vld [vmem:[#allocation25 + $0x58] sm:$0xf]
    %v2583 = vld [vmem:[#allocation25 + $0x5c] sm:$0xf]
    %v2584 = vld [vmem:[#allocation25 + $0x60] sm:$0xf]
    %v2585 = vld [vmem:[#allocation25 + $0x64] sm:$0xf]
    %v2586 = vld [vmem:[#allocation25 + $0x68] sm:$0xf]
    %v2587 = vld [vmem:[#allocation25 + $0x6c] sm:$0xf]
    %v2588 = vld [vmem:[#allocation25 + $0x70] sm:$0xf]
    %v2589 = vld [vmem:[#allocation25 + $0x74] sm:$0xf]
    %v2590 = vld [vmem:[#allocation25 + $0x78] sm:$0xf]
    %v2591 = vld [vmem:[#allocation25 + $0x7c] sm:$0xf]
    %v2592 = vld [vmem:[%s24] sm:$0xf]
    %v2593 = vld [vmem:[%s24 + $0x4] sm:$0xf]
    %v2594 = vld [vmem:[%s24 + $0x8] sm:$0xf]
    %v2595 = vld [vmem:[%s24 + $0xc] sm:$0xf]
    %v2600 = vunpack.c.l.b16 %v2592
    %v2601 = vunpack.c.l.b16 %v2593
    %v2602 = vunpack.c.l.b16 %v2594
    %v2603 = vunpack.c.l.b16 %v2595
    %v2604 = vpack.c.b16 %v2601, %v2600
    %v2605 = vpack.c.b16 %v2603, %v2602
    %vm2608 = vcmask 261120
    %v2610 = vsel %vm2608, %v296, 0
    %2612 = vmatprep.subr.bf16.mxu0 0
    %2613 = vmatpush1.bf16.msra.mxu0 0
    %2614 = vmatprep.subr.bf16.mxu0 0
    %2615 = vmatpush1.bf16.msra.mxu0 0
    %2616 = vmatprep.subr.bf16.mxu0 0
    %2617 = vmatpush1.bf16.msra.mxu0 0
    %2618 = vmatprep.subr.bf16.mxu0 0
    %2619 = vmatpush1.bf16.msra.mxu0 0
    %2620 = vmatprep.subr.bf16.mxu0 0
    %2621 = vmatpush1.bf16.msra.mxu0 0
    %2622 = vmatprep.subr.bf16.mxu0 0
    %2623 = vmatpush1.bf16.msra.mxu0 0
    %2624 = vmatprep.subr.bf16.mxu0 0
    %2625 = vmatpush1.bf16.msra.mxu0 %v2605
    %2626 = vmatprep.subr.bf16.mxu0 0
    %2627 = vmatpush1.bf16.msra.mxu0 %v2604
    %2628 = vmatprep.subr.bf16.mxu0 0
    %2629 = vmatpush2.bf16.msra.mxu0 0
    %2630 = vmatprep.subr.bf16.mxu0 0
    %2631 = vmatpush2.bf16.msra.mxu0 0
    %2632 = vmatprep.subr.bf16.mxu0 0
    %2633 = vmatpush2.bf16.msra.mxu0 0
    %2634 = vmatprep.subr.bf16.mxu0 0
    %2635 = vmatpush2.bf16.msra.mxu0 0
    %2636 = vmatprep.subr.bf16.mxu0 0
    %2637 = vmatpush2.bf16.msra.mxu0 0
    %2638 = vmatprep.subr.bf16.mxu0 0
    %2639 = vmatpush2.bf16.msra.mxu0 0
    %2640 = vmatprep.subr.bf16.mxu0 0
    %2641 = vmatpush2.bf16.msra.mxu0 0
    %2642 = vmatprep.subr.bf16.mxu0 0
    %2643 = vmatpush2.bf16.msra.mxu0 0
    %2644 = vmatprep.mubr.bf16.mxu0 0
    %2645 = vmatmul.mubr.bf16.gmra.mxu0 %v2610
    %v2646 = vpop.f32.mrf.mxu0
    %v2647 = vadd.f32 0.0, %v2646
    %v2648 = vpop.f32.mrf.mxu0
    %v2649 = vpop.f32.mrf.mxu0
    %v2650 = vadd.f32 0.0, %v2649
    %v2651 = vpop.f32.mrf.mxu0
    %2652 = vdwg.mxu0
    %v2685 = vunpack.c.l.b16 %v2560
    %v2686 = vunpack.c.l.b16 %v2561
    %v2687 = vunpack.c.l.b16 %v2562
    %v2688 = vunpack.c.l.b16 %v2563
    %v2689 = vunpack.c.l.b16 %v2564
    %v2690 = vunpack.c.l.b16 %v2565
    %v2691 = vunpack.c.l.b16 %v2566
    %v2692 = vunpack.c.l.b16 %v2567
    %v2693 = vunpack.c.l.b16 %v2568
    %v2694 = vunpack.c.l.b16 %v2569
    %v2695 = vunpack.c.l.b16 %v2570
    %v2696 = vunpack.c.l.b16 %v2571
    %v2697 = vunpack.c.l.b16 %v2572
    %v2698 = vunpack.c.l.b16 %v2573
    %v2699 = vunpack.c.l.b16 %v2574
    %v2700 = vunpack.c.l.b16 %v2575
    %v2701 = vunpack.c.l.b16 %v2576
    %v2702 = vunpack.c.l.b16 %v2577
    %v2703 = vunpack.c.l.b16 %v2578
    %v2704 = vunpack.c.l.b16 %v2579
    %v2705 = vunpack.c.l.b16 %v2580
    %v2706 = vunpack.c.l.b16 %v2581
    %v2707 = vunpack.c.l.b16 %v2582
    %v2708 = vunpack.c.l.b16 %v2583
    %v2709 = vunpack.c.l.b16 %v2584
    %v2710 = vunpack.c.l.b16 %v2585
    %v2711 = vunpack.c.l.b16 %v2586
    %v2712 = vunpack.c.l.b16 %v2587
    %v2713 = vunpack.c.l.b16 %v2588
    %v2714 = vunpack.c.l.b16 %v2589
    %v2715 = vunpack.c.l.b16 %v2590
    %v2716 = vunpack.c.l.b16 %v2591
    %v2717 = vpack.c.b16 %v2686, %v2685
    %v2718 = vpack.c.b16 %v2688, %v2687
    %v2719 = vpack.c.b16 %v2690, %v2689
    %v2720 = vpack.c.b16 %v2692, %v2691
    %v2721 = vpack.c.b16 %v2694, %v2693
    %v2722 = vpack.c.b16 %v2696, %v2695
    %v2723 = vpack.c.b16 %v2698, %v2697
    %v2724 = vpack.c.b16 %v2700, %v2699
    %v2725 = vpack.c.b16 %v2702, %v2701
    %v2726 = vpack.c.b16 %v2704, %v2703
    %v2727 = vpack.c.b16 %v2706, %v2705
    %v2728 = vpack.c.b16 %v2708, %v2707
    %v2729 = vpack.c.b16 %v2710, %v2709
    %v2730 = vpack.c.b16 %v2712, %v2711
    %v2731 = vpack.c.b16 %v2714, %v2713
    %v2732 = vpack.c.b16 %v2716, %v2715
    %2749 = vmatprep.subr.bf16.mxu0 0
    %2750 = vmatpush1.bf16.msra.mxu0 %v2724
    %2751 = vmatprep.subr.bf16.mxu0 0
    %2752 = vmatpush1.bf16.msra.mxu0 %v2723
    %2753 = vmatprep.subr.bf16.mxu0 0
    %2754 = vmatpush1.bf16.msra.mxu0 %v2722
    %2755 = vmatprep.subr.bf16.mxu0 0
    %2756 = vmatpush1.bf16.msra.mxu0 %v2721
    %2757 = vmatprep.subr.bf16.mxu0 0
    %2758 = vmatpush1.bf16.msra.mxu0 %v2720
    %2759 = vmatprep.subr.bf16.mxu0 0
    %2760 = vmatpush1.bf16.msra.mxu0 %v2719
    %2761 = vmatprep.subr.bf16.mxu0 0
    %2762 = vmatpush1.bf16.msra.mxu0 %v2718
    %2763 = vmatprep.subr.bf16.mxu0 0
    %2764 = vmatpush1.bf16.msra.mxu0 %v2717
    %2765 = vmatprep.subr.bf16.mxu0 0
    %2766 = vmatpush2.bf16.msra.mxu0 %v2732
    %2767 = vmatprep.subr.bf16.mxu0 0
    %2768 = vmatpush2.bf16.msra.mxu0 %v2731
    %2769 = vmatprep.subr.bf16.mxu0 0
    %2770 = vmatpush2.bf16.msra.mxu0 %v2730
    %2771 = vmatprep.subr.bf16.mxu0 0
    %2772 = vmatpush2.bf16.msra.mxu0 %v2729
    %2773 = vmatprep.subr.bf16.mxu0 0
    %2774 = vmatpush2.bf16.msra.mxu0 %v2728
    %2775 = vmatprep.subr.bf16.mxu0 0
    %2776 = vmatpush2.bf16.msra.mxu0 %v2727
    %2777 = vmatprep.subr.bf16.mxu0 0
    %2778 = vmatpush2.bf16.msra.mxu0 %v2726
    %2779 = vmatprep.subr.bf16.mxu0 0
    %2780 = vmatpush2.bf16.msra.mxu0 %v2725
    %2781 = vmatprep.mubr.bf16.mxu0 %v2559
    %2782 = vmatmul.mubr.bf16.gmra.mxu0 %v2558
    %v2783 = vpop.f32.mrf.mxu0
    %v2784 = vadd.f32 %v2647, %v2783
    %v2785 = vpop.f32.mrf.mxu0
    %v2786 = vpop.f32.mrf.mxu0
    %v2787 = vadd.f32 %v2650, %v2786
    %v2788 = vpop.f32.mrf.mxu0
    %2789 = vdwg.mxu0
    %v2790 = vld [vmem:[%s25] sm:$0x1]
    %v2792 = vlaneseq
    %v2793 = vshrl.u32 %v2792, 7
    %v2794 = vsub.s32 0, %v2793
    %v2795 = vrot.slane %v2790, %v2794
    %v2797 = vadd.f32 %v2784, %v2795
    %v2798 = vadd.f32 %v2787, %v2795
    %v2799 = vmax.f32 %v2797, 0.0
    %v2800 = vmax.f32 %v2798, 0.0
    %v2801 = vpack.c.bf16 %v2800, %v2799
    %v2802 = vunpack.c.l.bf16 %v2801
    %v2803 = vunpack.c.h.bf16 %v2801
    %v2804 = vld [vmem:[%s26] sm:$0x1]
    %v2805 = vlaneseq
    %v2806 = vshrl.u32 %v2805, 7
    %v2807 = vsub.s32 0, %v2806
    %v2808 = vrot.slane %v2804, %v2807
    %v2809 = vmul.f32 %v2802, %v2808
    %v2810 = vmul.f32 %v2803, %v2808
    %2811 = vadd.xlane.f32.xlu0 %v2809
    %v2812 = vpop.xlane.xlu0 %2811
    %2813 = vadd.xlane.f32.xlu0 %v2810
    %v2814 = vpop.xlane.xlu0 %2813
    %v2815 = vld [vmem:[%s26 + $0x1] sm:$0x1]
    %v2816 = vlaneseq
    %v2817 = vshrl.u32 %v2816, 7
    %v2818 = vsub.s32 0, %v2817
    %v2819 = vrot.slane %v2815, %v2818
    %v2820 = vmul.f32 %v2802, %v2819
    %v2821 = vmul.f32 %v2803, %v2819
    %2822 = vadd.xlane.f32.xlu0 %v2820
    %v2823 = vpop.xlane.xlu0 %2822
    %2824 = vadd.xlane.f32.xlu0 %v2821
    %v2825 = vpop.xlane.xlu0 %2824
    %v2826 = vld [vmem:[%s26 + $0x2] sm:$0x1]
    %v2827 = vlaneseq
    %v2828 = vshrl.u32 %v2827, 7
    %v2829 = vsub.s32 0, %v2828
    %v2830 = vrot.slane %v2826, %v2829
    %v2831 = vmul.f32 %v2802, %v2830
    %v2832 = vmul.f32 %v2803, %v2830
    %2833 = vadd.xlane.f32.xlu0 %v2831
    %v2834 = vpop.xlane.xlu0 %2833
    %2835 = vadd.xlane.f32.xlu0 %v2832
    %v2836 = vpop.xlane.xlu0 %2835
    %vm2837 = vcmask 7168
    %v2838 = vsel %vm2837, %v2812, %v2823
    %v2839 = vsel %vm2837, %v2814, %v2825
    %vm2840 = vcmask 15360
    %v2841 = vsel %vm2840, %v2838, %v2834
    %v2842 = vsel %vm2840, %v2839, %v2836
    %v2843 = vld [vmem:[%s27] sm:$0x1]
    %v2845 = vlaneseq
    %v2846 = vshrl.u32 %v2845, 7
    %v2847 = vsub.s32 0, %v2846
    %v2848 = vrot.slane %v2843, %v2847
    %v2850 = vadd.f32 %v2841, %v2848
    %v2851 = vadd.f32 %v2842, %v2848
    %2854 = vrot.lane.b32.xlu0 %v2309, 3
    %v2855 = vpop.permute.xlu0 %2854
    %2856 = vrot.lane.b32.xlu0 %v2310, 3
    %v2857 = vpop.permute.xlu0 %2856
    %vm2860 = vcmask 23552
    %v2861 = vsel %vm2860, %v2850, %v2855
    %v2862 = vsel %vm2860, %v2851, %v2857
    %vm2863 = vcmask 31744
    %2864 = vst.msk [vmem:[%s28] sm:$0xff] %vm2863, %v2861
    %2865 = vst.msk [vmem:[%s28 + $0x8] sm:$0xff] %vm2863, %v2862
    // Predicated region
    $region174: #{tpu_custom_call.1} parent=1 // pred_check
      _
    $region175: #{tpu_custom_call.1} parent=1 // pred_check_branch
      %2867 = sbr.rel (0) target = $region177
    $region176: #{tpu_custom_call.1} parent=1 // pred_region
      _
    $region177: #{tpu_custom_call.1} parent=1 // pred_fallthru
      _
    // Predicated region
    $region178: #{tpu_custom_call.1} parent=1 // pred_check
      _
    $region179: #{tpu_custom_call.1} parent=1 // pred_check_branch
      %2869 = sbr.rel (0) target = $region181
    $region180: #{tpu_custom_call.1} parent=1 // pred_region
      _
    $region181: #{tpu_custom_call.1} parent=1 // pred_fallthru
      _
    %2870 = vsyncpa [#allocation4], 1
    %2871 = vsyncpa [#allocation6], 1
    %2872 = vsyncpa [#allocation9], 1
    %2873 = vsyncpa [#allocation12], 1
    %2874 = vsyncpa [#allocation15], 1
    %2875 = vsyncpa [#allocation18], 1
    %2876 = vsyncpa [#allocation21], 1
    %2877 = vsyncpa [#allocation24], 1

</llo_original>
